<compile_context>
chip_gen: v7x
topology: tpu7x:2x2x1
jax: 0.10.0
libtpu: 0.0.40
codegen_flags: <defaults>
</compile_context>

<pallas_src>
import jax
import jax.numpy as jnp
from jax.experimental import pallas as pl
from jax.experimental.pallas import tpu as pltpu

INPUT_DIM = 768
HIDDEN_DIM = 512
NUM_CLASSES = 30
N_PAD = 128           # class dim padded to one full 128-lane vreg
MAX_TILE_B = 1024     # batch-tile cap (total VMEM use ~13 MiB at this size)


def mlp_kernel(x_ref, w1_ref, b1_ref, w2_ref, b2_ref, o_ref):
    # Cast activations to bf16 in-kernel (free VPU op hidden under the MXU);
    # both matmuls accumulate in f32 via preferred_element_type.
    x = x_ref[...].astype(jnp.bfloat16)
    h = jnp.dot(x, w1_ref[...], preferred_element_type=jnp.float32)
    h = jnp.maximum(h + b1_ref[...], 0.0)          # bias (1,512) broadcast + ReLU
    # Dropout(0.3): identity in eval mode.
    h = h.astype(jnp.bfloat16)
    out = jnp.dot(h, w2_ref[...], preferred_element_type=jnp.float32)
    o_ref[...] = (out + b2_ref[...]).astype(o_ref.dtype)


def _pick_tile_b(batch: int) -> int:
    """Whole batch when small; otherwise ~B/4 (sublane-rounded, capped) so
    there are >=4 grid steps for pipelining / both v7x TensorCores."""
    if batch <= 256:
        return batch                      # full-dim block is always legal
    tile = -(-batch // 4)                 # ceil(B / 4)
    tile = ((tile + 7) // 8) * 8          # sublane multiple
    return min(tile, MAX_TILE_B)


def prepare_params(w1, b1, w2, b2):
    """One-time weight prep (keep OUT of the per-call path): bf16 weights,
    f32 biases, class dim padded 30 -> 128 for lane-dense MXU/stores."""
    w1_bf = jnp.asarray(w1, jnp.bfloat16)
    b1_f = jnp.asarray(b1, jnp.float32).reshape(1, HIDDEN_DIM)
    w2_bf = jnp.asarray(w2, jnp.bfloat16)
    b2_f = jnp.asarray(b2, jnp.float32).reshape(1, -1)
    w2_p = jnp.pad(w2_bf, ((0, 0), (0, N_PAD - w2_bf.shape[1])))
    b2_p = jnp.pad(b2_f, ((0, 0), (0, N_PAD - b2_f.shape[1])))
    return w1_bf, b1_f, w2_p, b2_p


@jax.jit
def extended_classifier(x, w1_bf, b1_f, w2_p, b2_p):
    """x: [B, 768] (f32 or bf16); weights from prepare_params(). Returns bf16 [B, 30]."""
    B = x.shape[0]
    tile_b = _pick_tile_b(B)
    n_tiles = pl.cdiv(B, tile_b)

    cost = pl.CostEstimate(
        flops=2 * B * INPUT_DIM * HIDDEN_DIM + 2 * B * HIDDEN_DIM * N_PAD,
        transcendentals=0,
        bytes_accessed=(B * INPUT_DIM * x.dtype.itemsize      # x stream
                        + B * N_PAD * 2                        # bf16 logits
                        + INPUT_DIM * HIDDEN_DIM * 2           # w1
                        + HIDDEN_DIM * N_PAD * 2               # w2 (padded)
                        + (HIDDEN_DIM + N_PAD) * 4),           # biases
    )

    resident = dict(pipeline_mode=pl.Buffered(1))  # constant block: no 2nd buffer
    out = pl.pallas_call(
        mlp_kernel,
        out_shape=jax.ShapeDtypeStruct((B, N_PAD), jnp.bfloat16),
        grid_spec=pl.GridSpec(
            grid=(n_tiles,),
            in_specs=[
                pl.BlockSpec((tile_b, INPUT_DIM), lambda i: (i, 0)),
                pl.BlockSpec((INPUT_DIM, HIDDEN_DIM), lambda i: (0, 0), **resident),
                pl.BlockSpec((1, HIDDEN_DIM), lambda i: (0, 0), **resident),
                pl.BlockSpec((HIDDEN_DIM, N_PAD), lambda i: (0, 0), **resident),
                pl.BlockSpec((1, N_PAD), lambda i: (0, 0), **resident),
            ],
            out_specs=pl.BlockSpec((tile_b, N_PAD), lambda i: (i, 0)),
        ),
        compiler_params=pltpu.CompilerParams(
            dimension_semantics=("parallel",),
            vmem_limit_bytes=32 * 1024 * 1024),
        cost_estimate=cost,
    )(x, w1_bf, b1_f, w2_p, b2_p)

    # Consumers that can slice lazily should take the padded (B, 128) block;
    # we slice here to honor the nn.Module's (B, 30) contract.
    return out[:, :NUM_CLASSES]


def init_params(key):
    k1, k2, k3, k4 = jax.random.split(key, 4)
    # Deterministic, PyTorch-like uniform(-1/sqrt(fan_in), 1/sqrt(fan_in)) init.
    lim1 = 1.0 / jnp.sqrt(INPUT_DIM)
    lim2 = 1.0 / jnp.sqrt(HIDDEN_DIM)
    w1 = jax.random.uniform(k1, (INPUT_DIM, HIDDEN_DIM), jnp.float32, -lim1, lim1)
    b1 = jax.random.uniform(k2, (1, HIDDEN_DIM), jnp.float32, -lim1, lim1)
    w2 = jax.random.uniform(k3, (HIDDEN_DIM, NUM_CLASSES), jnp.float32, -lim2, lim2)
    b2 = jax.random.uniform(k4, (1, NUM_CLASSES), jnp.float32, -lim2, lim2)
    return w1, b1, w2, b2


def _ref(x, w1, b1, w2, b2):
    # Pure-JAX f32 reference (eval-mode dropout = identity).
    return jnp.maximum(x @ w1 + b1, 0.0) @ w2 + b2


if __name__ == "__main__":
    key = jax.random.PRNGKey(0)
    kx, kp, kx2 = jax.random.split(key, 3)
    w1, b1, w2, b2 = init_params(kp)
    params = prepare_params(w1, b1, w2, b2)        # one-time weight prep

    # Small main test (single tile).
    B = 8
    x = jax.random.normal(kx, (B, INPUT_DIM), jnp.float32)
    out = jax.block_until_ready(extended_classifier(x, *params))
    ref = _ref(x, w1, b1, w2, b2)
    assert out.shape == (B, NUM_CLASSES)
    # bf16 weights/activations/logits -> ~1e-2 level error; f32 accumulation.
    assert jnp.allclose(out.astype(jnp.float32), ref, atol=3e-2, rtol=3e-2), (
        float(jnp.max(jnp.abs(out.astype(jnp.float32) - ref))))

    # Multi-tile path with a ragged (masked) last block: B=260 -> tile 72, grid 4.
    B2 = 260
    x2 = jax.random.normal(kx2, (B2, INPUT_DIM), jnp.float32)
    out2 = jax.block_until_ready(extended_classifier(x2, *params))
    ref2 = _ref(x2, w1, b1, w2, b2)
    assert out2.shape == (B2, NUM_CLASSES)
    assert jnp.allclose(out2.astype(jnp.float32), ref2, atol=3e-2, rtol=3e-2), (
        float(jnp.max(jnp.abs(out2.astype(jnp.float32) - ref2))))

    print("KERNEL_OK")
</pallas_src>

<mosaic_0001>
module attributes {stable_mosaic.version = 11 : i64} {
  func.func @mlp_kernel(%arg0: i32, %arg1: memref<8x768xf32, #tpu.memory_space<vmem>>, %arg2: memref<768x512xbf16, #tpu.memory_space<vmem>>, %arg3: memref<1x512xf32, #tpu.memory_space<vmem>>, %arg4: memref<512x128xbf16, #tpu.memory_space<vmem>>, %arg5: memref<1x128xf32, #tpu.memory_space<vmem>>, %arg6: memref<8x128xbf16, #tpu.memory_space<vmem>>) attributes {dimension_semantics = [#tpu.dimension_semantics<parallel>], iteration_bounds = array<i64: 1>, scalar_prefetch = 0 : i64, scratch_operands = 0 : i64, tpu.core_type = #tpu.core_type<tc>, window_params = [{transform_indices = @transform_0, window_bounds = array<i64: 8, 768>}, {pipeline_mode = #tpu.pipeline_mode<synchronous>, transform_indices = @transform_1, window_bounds = array<i64: 768, 512>}, {pipeline_mode = #tpu.pipeline_mode<synchronous>, transform_indices = @transform_2, window_bounds = array<i64: 1, 512>}, {pipeline_mode = #tpu.pipeline_mode<synchronous>, transform_indices = @transform_3, window_bounds = array<i64: 512, 128>}, {pipeline_mode = #tpu.pipeline_mode<synchronous>, transform_indices = @transform_4, window_bounds = array<i64: 1, 128>}, {transform_indices = @transform_5, window_bounds = array<i64: 8, 128>}]} {
    %c0 = arith.constant 0 : index
    %c0_0 = arith.constant 0 : index
    %0 = vector.load %arg1[%c0, %c0_0] : memref<8x768xf32, #tpu.memory_space<vmem>>, vector<8x768xf32>
    %1 = arith.truncf %0 : vector<8x768xf32> to vector<8x768xbf16>
    %c0_1 = arith.constant 0 : index
    %c0_2 = arith.constant 0 : index
    %2 = vector.load %arg2[%c0_1, %c0_2] : memref<768x512xbf16, #tpu.memory_space<vmem>>, vector<768x512xbf16>
    %cst = arith.constant dense<0.000000e+00> : vector<8x512xf32>
    %3 = tpu.matmul %1, %2, %cst {dimension_numbers = #tpu.dot_dimension_numbers<[1], [0], [0], [1], [0, 0, 1, 1], [], []>} : vector<8x768xbf16>, vector<768x512xbf16>, vector<8x512xf32> -> vector<8x512xf32>
    %c0_3 = arith.constant 0 : index
    %c0_4 = arith.constant 0 : index
    %4 = vector.load %arg3[%c0_3, %c0_4] : memref<1x512xf32, #tpu.memory_space<vmem>>, vector<1x512xf32>
    %5 = vector.broadcast %4 : vector<1x512xf32> to vector<8x512xf32>
    %6 = arith.addf %3, %5 : vector<8x512xf32>
    %cst_5 = arith.constant 0.000000e+00 : f32
    %7 = vector.broadcast %cst_5 : f32 to vector<8x512xf32>
    %8 = arith.maximumf %6, %7 : vector<8x512xf32>
    %9 = arith.truncf %8 : vector<8x512xf32> to vector<8x512xbf16>
    %c0_6 = arith.constant 0 : index
    %c0_7 = arith.constant 0 : index
    %10 = vector.load %arg4[%c0_6, %c0_7] : memref<512x128xbf16, #tpu.memory_space<vmem>>, vector<512x128xbf16>
    %cst_8 = arith.constant dense<0.000000e+00> : vector<8x128xf32>
    %11 = tpu.matmul %9, %10, %cst_8 {dimension_numbers = #tpu.dot_dimension_numbers<[1], [0], [0], [1], [0, 0, 1, 1], [], []>} : vector<8x512xbf16>, vector<512x128xbf16>, vector<8x128xf32> -> vector<8x128xf32>
    %c0_9 = arith.constant 0 : index
    %c0_10 = arith.constant 0 : index
    %12 = vector.load %arg5[%c0_9, %c0_10] : memref<1x128xf32, #tpu.memory_space<vmem>>, vector<1x128xf32>
    %13 = vector.broadcast %12 : vector<1x128xf32> to vector<8x128xf32>
    %14 = arith.addf %11, %13 : vector<8x128xf32>
    %15 = arith.truncf %14 : vector<8x128xf32> to vector<8x128xbf16>
    %c0_11 = arith.constant 0 : index
    %c0_12 = arith.constant 0 : index
    %16 = vector.load %arg6[%c0_11, %c0_12] : memref<8x128xbf16, #tpu.memory_space<vmem>>, vector<8x128xbf16>
    tpu.vector_store %arg6[%c0_11, %c0_12], %15 {strides = array<i32>} : memref<8x128xbf16, #tpu.memory_space<vmem>>, vector<8x128xbf16>,
    return
  }
  func.func @transform_0(%arg0: i32) -> (i32, i32) {
    %c0_i32 = arith.constant 0 : i32
    %c0_i32_0 = arith.constant 0 : i32
    return %arg0, %c0_i32 : i32, i32
  }
  func.func @transform_1(%arg0: i32) -> (i32, i32) {
    %c0_i32 = arith.constant 0 : i32
    %c0_i32_0 = arith.constant 0 : i32
    %c0_i32_1 = arith.constant 0 : i32
    return %c0_i32, %c0_i32_0 : i32, i32
  }
  func.func @transform_2(%arg0: i32) -> (i32, i32) {
    %c0_i32 = arith.constant 0 : i32
    %c0_i32_0 = arith.constant 0 : i32
    %c0_i32_1 = arith.constant 0 : i32
    return %c0_i32, %c0_i32_0 : i32, i32
  }
  func.func @transform_3(%arg0: i32) -> (i32, i32) {
    %c0_i32 = arith.constant 0 : i32
    %c0_i32_0 = arith.constant 0 : i32
    %c0_i32_1 = arith.constant 0 : i32
    return %c0_i32, %c0_i32_0 : i32, i32
  }
  func.func @transform_4(%arg0: i32) -> (i32, i32) {
    %c0_i32 = arith.constant 0 : i32
    %c0_i32_0 = arith.constant 0 : i32
    %c0_i32_1 = arith.constant 0 : i32
    return %c0_i32, %c0_i32_0 : i32, i32
  }
  func.func @transform_5(%arg0: i32) -> (i32, i32) {
    %c0_i32 = arith.constant 0 : i32
    %c0_i32_0 = arith.constant 0 : i32
    return %arg0, %c0_i32 : i32, i32
  }
}

</mosaic_0001>

<llo_original>
// kernel: extended_classifier.1
$region0: #{extended_classifier.1}
  #allocation0 [shape = 'u32[]', space=smem, size = 0x4, offset = 0x4, fixed_abs, tag = 'smem constant byte address 0x4 - core index']
  #allocation1 [shape = 'u32[144,128]{1,0:T(1,128)}', space=vmem, size = 0x12000, scoped, tag = 'internal scratch']
  %s0 = inlined_call_operand.hbm [shape: f32[8,768], index: 0, kind: input, shape index: {}]
  %s1 = inlined_call_operand.hbm [shape: bf16[768,512], index: 1, kind: input, shape index: {}]
  %s2 = inlined_call_operand.vmem [shape: f32[1,512], index: 2, kind: input, shape index: {}]
  %s3 = inlined_call_operand.hbm [shape: bf16[512,128], index: 3, kind: input, shape index: {}]
  %s4 = inlined_call_operand.vmem [shape: f32[1,128], index: 4, kind: input, shape index: {}]
  %s5 = inlined_call_operand.hbm [shape: bf16[8,128], index: 5, kind: output, shape index: {}]
  %s6 = sld [smem:[#allocation0]]
  $region42: #{extended_classifier.1} parent=0
    _
  %s8 = ssub.s32 1, %s6
  %s9 = scalar_select 0, %s8, %s6
  $region1: #{extended_classifier.1} parent=0
    #allocation2 [shape = 'u8[24576]{0}', space=vmem, size = 0x6000, scoped, tag = 'input window, operand 0, single buffered']
    #allocation3 [shape = 's32[1]{0}', space=sflag, size = 0x4, scoped, tag = 'scoped memory for extended_classifier.1']
    #allocation4 [shape = 's32[1]{0}', space=sflag, size = 0x4, scoped, tag = 'scoped memory for extended_classifier.1']
    #allocation5 [shape = 'u8[786432]{0}', space=vmem, size = 0xc0000, scoped, tag = 'input window, operand 1, single buffered']
    #allocation6 [shape = 's32[1]{0}', space=sflag, size = 0x4, scoped, tag = 'scoped memory for extended_classifier.1']
    #allocation7 [shape = 'u8[131072]{0}', space=vmem, size = 0x20000, scoped, tag = 'input window, operand 3, single buffered']
    #allocation8 [shape = 'u8[2048]{0}', space=vmem, size = 0x800, scoped, tag = 'output window, operand 0, single buffered']
    %10 = vsyncpa [#allocation3], 0
    %11 = vsyncpa [#allocation6], 0
    %12 = vsyncpa [#allocation4], 0
    // Predicated region
    $region2: #{extended_classifier.1} parent=1 // pred_check
      _
    $region3: #{extended_classifier.1} parent=1 // pred_check_branch
      %14 = sbr.rel (0) target = $region5
    $region4: #{extended_classifier.1} parent=1 // pred_region
      %s16 = ssub.s32 768, 768
      %17 = vsyncadd [#allocation3], %s16
      %s19 = sshll.u32 [#allocation2], 4
      %s20 = int_to_ptr.vmem [resolvable:$true] %s19
      %22 = dma.hbm_to_vmem [thread:$0]  %s0, 768, %s20, [#allocation3]
    $region5: #{extended_classifier.1} parent=1 // pred_fallthru
      _
    // Predicated region
    $region6: #{extended_classifier.1} parent=1 // pred_check
      _
    $region7: #{extended_classifier.1} parent=1 // pred_check_branch
      %24 = sbr.rel (0) target = $region9
    $region8: #{extended_classifier.1} parent=1 // pred_region
      %s26 = ssub.s32 24576, 24576
      %27 = vsyncadd [#allocation6], %s26
      %s28 = sshll.u32 [#allocation5], 4
      %s29 = int_to_ptr.vmem [resolvable:$true] %s28
      %34 = dma.hbm_to_vmem [thread:$0]  %s1, 24576, %s29, [#allocation6], 256, 256, 16
    $region9: #{extended_classifier.1} parent=1 // pred_fallthru
      _
    // Predicated region
    $region10: #{extended_classifier.1} parent=1 // pred_check
      _
    $region11: #{extended_classifier.1} parent=1 // pred_check_branch
      %36 = sbr.rel (0) target = $region13
    $region12: #{extended_classifier.1} parent=1 // pred_region
      _
    $region13: #{extended_classifier.1} parent=1 // pred_fallthru
      _
    // Predicated region
    $region14: #{extended_classifier.1} parent=1 // pred_check
      _
    $region15: #{extended_classifier.1} parent=1 // pred_check_branch
      %38 = sbr.rel (0) target = $region17
    $region16: #{extended_classifier.1} parent=1 // pred_region
      %s40 = ssub.s32 4096, 4096
      %41 = vsyncadd [#allocation6], %s40
      %s42 = sshll.u32 [#allocation7], 4
      %s43 = int_to_ptr.vmem [resolvable:$true] %s42
      %48 = dma.hbm_to_vmem [thread:$0]  %s3, 4096, %s43, [#allocation6], 64, 64, 4
    $region17: #{extended_classifier.1} parent=1 // pred_fallthru
      _
    // Predicated region
    $region18: #{extended_classifier.1} parent=1 // pred_check
      _
    $region19: #{extended_classifier.1} parent=1 // pred_check_branch
      %50 = sbr.rel (0) target = $region21
    $region20: #{extended_classifier.1} parent=1 // pred_region
      _
    $region21: #{extended_classifier.1} parent=1 // pred_fallthru
      _
    // Predicated region
    $region22: #{extended_classifier.1} parent=1 // pred_check
      _
    $region23: #{extended_classifier.1} parent=1 // pred_check_branch
      %52 = sbr.rel (0) target = $region25
    $region24: #{extended_classifier.1} parent=1 // pred_region
      %53 = dma.done [#allocation3], 768
    $region25: #{extended_classifier.1} parent=1 // pred_fallthru
      _
    // Predicated region
    $region26: #{extended_classifier.1} parent=1 // pred_check
      _
    $region27: #{extended_classifier.1} parent=1 // pred_check_branch
      %55 = sbr.rel (0) target = $region29
    $region28: #{extended_classifier.1} parent=1 // pred_region
      %56 = dma.done [#allocation6], 24576
    $region29: #{extended_classifier.1} parent=1 // pred_fallthru
      _
    // Predicated region
    $region30: #{extended_classifier.1} parent=1 // pred_check
      _
    $region31: #{extended_classifier.1} parent=1 // pred_check_branch
      %58 = sbr.rel (0) target = $region33
    $region32: #{extended_classifier.1} parent=1 // pred_region
      %59 = dma.done [#allocation6], 4096
    $region33: #{extended_classifier.1} parent=1 // pred_fallthru
      _
    %v61 = vld [vmem:[#allocation2] sm:$0xff]
    %v62 = vld [vmem:[#allocation2 + $0x8] sm:$0xff]
    %v63 = vld [vmem:[#allocation2 + $0x10] sm:$0xff]
    %v64 = vld [vmem:[#allocation2 + $0x18] sm:$0xff]
    %v65 = vld [vmem:[#allocation2 + $0x20] sm:$0xff]
    %v66 = vld [vmem:[#allocation2 + $0x28] sm:$0xff]
    %v67 = vpack.c.bf16 %v61, %v61
    %v68 = vpack.c.bf16 %v62, %v62
    %v69 = vpack.c.bf16 %v63, %v63
    %v70 = vpack.c.bf16 %v64, %v64
    %v71 = vpack.c.bf16 %v65, %v65
    %v72 = vpack.c.bf16 %v66, %v66
    %v73 = vld [vmem:[#allocation5] sm:$0xff]
    %v74 = vld [vmem:[#allocation5 + $0x8] sm:$0xff]
    %v75 = vld [vmem:[#allocation5 + $0x10] sm:$0xff]
    %v76 = vld [vmem:[#allocation5 + $0x18] sm:$0xff]
    %v77 = vld [vmem:[#allocation5 + $0x20] sm:$0xff]
    %v78 = vld [vmem:[#allocation5 + $0x28] sm:$0xff]
    %v79 = vld [vmem:[#allocation5 + $0x30] sm:$0xff]
    %v80 = vld [vmem:[#allocation5 + $0x38] sm:$0xff]
    %v81 = vld [vmem:[#allocation5 + $0x40] sm:$0xff]
    %v82 = vld [vmem:[#allocation5 + $0x48] sm:$0xff]
    %v83 = vld [vmem:[#allocation5 + $0x50] sm:$0xff]
    %v84 = vld [vmem:[#allocation5 + $0x58] sm:$0xff]
    %v85 = vld [vmem:[#allocation5 + $0x60] sm:$0xff]
    %v86 = vld [vmem:[#allocation5 + $0x68] sm:$0xff]
    %v87 = vld [vmem:[#allocation5 + $0x70] sm:$0xff]
    %v88 = vld [vmem:[#allocation5 + $0x78] sm:$0xff]
    %v89 = vld [vmem:[#allocation5 + $0x80] sm:$0xff]
    %v90 = vld [vmem:[#allocation5 + $0x88] sm:$0xff]
    %v91 = vld [vmem:[#allocation5 + $0x90] sm:$0xff]
    %v92 = vld [vmem:[#allocation5 + $0x98] sm:$0xff]
    %v93 = vld [vmem:[#allocation5 + $0xa0] sm:$0xff]
    %v94 = vld [vmem:[#allocation5 + $0xa8] sm:$0xff]
    %v95 = vld [vmem:[#allocation5 + $0xb0] sm:$0xff]
    %v96 = vld [vmem:[#allocation5 + $0xb8] sm:$0xff]
    %v97 = vld [vmem:[#allocation5 + $0xc0] sm:$0xff]
    %v98 = vld [vmem:[#allocation5 + $0xc8] sm:$0xff]
    %v99 = vld [vmem:[#allocation5 + $0xd0] sm:$0xff]
    %v100 = vld [vmem:[#allocation5 + $0xd8] sm:$0xff]
    %v101 = vld [vmem:[#allocation5 + $0xe0] sm:$0xff]
    %v102 = vld [vmem:[#allocation5 + $0xe8] sm:$0xff]
    %v103 = vld [vmem:[#allocation5 + $0xf0] sm:$0xff]
    %v104 = vld [vmem:[#allocation5 + $0xf8] sm:$0xff]
    %v105 = vld [vmem:[#allocation5 + $0x100] sm:$0xff]
    %v106 = vld [vmem:[#allocation5 + $0x108] sm:$0xff]
    %v107 = vld [vmem:[#allocation5 + $0x110] sm:$0xff]
    %v108 = vld [vmem:[#allocation5 + $0x118] sm:$0xff]
    %v109 = vld [vmem:[#allocation5 + $0x120] sm:$0xff]
    %v110 = vld [vmem:[#allocation5 + $0x128] sm:$0xff]
    %v111 = vld [vmem:[#allocation5 + $0x130] sm:$0xff]
    %v112 = vld [vmem:[#allocation5 + $0x138] sm:$0xff]
    %v113 = vld [vmem:[#allocation5 + $0x140] sm:$0xff]
    %v114 = vld [vmem:[#allocation5 + $0x148] sm:$0xff]
    %v115 = vld [vmem:[#allocation5 + $0x150] sm:$0xff]
    %v116 = vld [vmem:[#allocation5 + $0x158] sm:$0xff]
    %v117 = vld [vmem:[#allocation5 + $0x160] sm:$0xff]
    %v118 = vld [vmem:[#allocation5 + $0x168] sm:$0xff]
    %v119 = vld [vmem:[#allocation5 + $0x170] sm:$0xff]
    %v120 = vld [vmem:[#allocation5 + $0x178] sm:$0xff]
    %v121 = vld [vmem:[#allocation5 + $0x180] sm:$0xff]
    %v122 = vld [vmem:[#allocation5 + $0x188] sm:$0xff]
    %v123 = vld [vmem:[#allocation5 + $0x190] sm:$0xff]
    %v124 = vld [vmem:[#allocation5 + $0x198] sm:$0xff]
    %v125 = vld [vmem:[#allocation5 + $0x1a0] sm:$0xff]
    %v126 = vld [vmem:[#allocation5 + $0x1a8] sm:$0xff]
    %v127 = vld [vmem:[#allocation5 + $0x1b0] sm:$0xff]
    %v128 = vld [vmem:[#allocation5 + $0x1b8] sm:$0xff]
    %v129 = vld [vmem:[#allocation5 + $0x1c0] sm:$0xff]
    %v130 = vld [vmem:[#allocation5 + $0x1c8] sm:$0xff]
    %v131 = vld [vmem:[#allocation5 + $0x1d0] sm:$0xff]
    %v132 = vld [vmem:[#allocation5 + $0x1d8] sm:$0xff]
    %v133 = vld [vmem:[#allocation5 + $0x1e0] sm:$0xff]
    %v134 = vld [vmem:[#allocation5 + $0x1e8] sm:$0xff]
    %v135 = vld [vmem:[#allocation5 + $0x1f0] sm:$0xff]
    %v136 = vld [vmem:[#allocation5 + $0x1f8] sm:$0xff]
    %v137 = vld [vmem:[#allocation5 + $0x200] sm:$0xff]
    %v138 = vld [vmem:[#allocation5 + $0x208] sm:$0xff]
    %v139 = vld [vmem:[#allocation5 + $0x210] sm:$0xff]
    %v140 = vld [vmem:[#allocation5 + $0x218] sm:$0xff]
    %v141 = vld [vmem:[#allocation5 + $0x220] sm:$0xff]
    %v142 = vld [vmem:[#allocation5 + $0x228] sm:$0xff]
    %v143 = vld [vmem:[#allocation5 + $0x230] sm:$0xff]
    %v144 = vld [vmem:[#allocation5 + $0x238] sm:$0xff]
    %v145 = vld [vmem:[#allocation5 + $0x240] sm:$0xff]
    %v146 = vld [vmem:[#allocation5 + $0x248] sm:$0xff]
    %v147 = vld [vmem:[#allocation5 + $0x250] sm:$0xff]
    %v148 = vld [vmem:[#allocation5 + $0x258] sm:$0xff]
    %v149 = vld [vmem:[#allocation5 + $0x260] sm:$0xff]
    %v150 = vld [vmem:[#allocation5 + $0x268] sm:$0xff]
    %v151 = vld [vmem:[#allocation5 + $0x270] sm:$0xff]
    %v152 = vld [vmem:[#allocation5 + $0x278] sm:$0xff]
    %v153 = vld [vmem:[#allocation5 + $0x280] sm:$0xff]
    %v154 = vld [vmem:[#allocation5 + $0x288] sm:$0xff]
    %v155 = vld [vmem:[#allocation5 + $0x290] sm:$0xff]
    %v156 = vld [vmem:[#allocation5 + $0x298] sm:$0xff]
    %v157 = vld [vmem:[#allocation5 + $0x2a0] sm:$0xff]
    %v158 = vld [vmem:[#allocation5 + $0x2a8] sm:$0xff]
    %v159 = vld [vmem:[#allocation5 + $0x2b0] sm:$0xff]
    %v160 = vld [vmem:[#allocation5 + $0x2b8] sm:$0xff]
    %v161 = vld [vmem:[#allocation5 + $0x2c0] sm:$0xff]
    %v162 = vld [vmem:[#allocation5 + $0x2c8] sm:$0xff]
    %v163 = vld [vmem:[#allocation5 + $0x2d0] sm:$0xff]
    %v164 = vld [vmem:[#allocation5 + $0x2d8] sm:$0xff]
    %v165 = vld [vmem:[#allocation5 + $0x2e0] sm:$0xff]
    %v166 = vld [vmem:[#allocation5 + $0x2e8] sm:$0xff]
    %v167 = vld [vmem:[#allocation5 + $0x2f0] sm:$0xff]
    %v168 = vld [vmem:[#allocation5 + $0x2f8] sm:$0xff]
    %v169 = vld [vmem:[#allocation5 + $0x300] sm:$0xff]
    %v170 = vld [vmem:[#allocation5 + $0x308] sm:$0xff]
    %v171 = vld [vmem:[#allocation5 + $0x310] sm:$0xff]
    %v172 = vld [vmem:[#allocation5 + $0x318] sm:$0xff]
    %v173 = vld [vmem:[#allocation5 + $0x320] sm:$0xff]
    %v174 = vld [vmem:[#allocation5 + $0x328] sm:$0xff]
    %v175 = vld [vmem:[#allocation5 + $0x330] sm:$0xff]
    %v176 = vld [vmem:[#allocation5 + $0x338] sm:$0xff]
    %v177 = vld [vmem:[#allocation5 + $0x340] sm:$0xff]
    %v178 = vld [vmem:[#allocation5 + $0x348] sm:$0xff]
    %v179 = vld [vmem:[#allocation5 + $0x350] sm:$0xff]
    %v180 = vld [vmem:[#allocation5 + $0x358] sm:$0xff]
    %v181 = vld [vmem:[#allocation5 + $0x360] sm:$0xff]
    %v182 = vld [vmem:[#allocation5 + $0x368] sm:$0xff]
    %v183 = vld [vmem:[#allocation5 + $0x370] sm:$0xff]
    %v184 = vld [vmem:[#allocation5 + $0x378] sm:$0xff]
    %v185 = vld [vmem:[#allocation5 + $0x380] sm:$0xff]
    %v186 = vld [vmem:[#allocation5 + $0x388] sm:$0xff]
    %v187 = vld [vmem:[#allocation5 + $0x390] sm:$0xff]
    %v188 = vld [vmem:[#allocation5 + $0x398] sm:$0xff]
    %v189 = vld [vmem:[#allocation5 + $0x3a0] sm:$0xff]
    %v190 = vld [vmem:[#allocation5 + $0x3a8] sm:$0xff]
    %v191 = vld [vmem:[#allocation5 + $0x3b0] sm:$0xff]
    %v192 = vld [vmem:[#allocation5 + $0x3b8] sm:$0xff]
    %v193 = vld [vmem:[#allocation5 + $0x3c0] sm:$0xff]
    %v194 = vld [vmem:[#allocation5 + $0x3c8] sm:$0xff]
    %v195 = vld [vmem:[#allocation5 + $0x3d0] sm:$0xff]
    %v196 = vld [vmem:[#allocation5 + $0x3d8] sm:$0xff]
    %v197 = vld [vmem:[#allocation5 + $0x3e0] sm:$0xff]
    %v198 = vld [vmem:[#allocation5 + $0x3e8] sm:$0xff]
    %v199 = vld [vmem:[#allocation5 + $0x3f0] sm:$0xff]
    %v200 = vld [vmem:[#allocation5 + $0x3f8] sm:$0xff]
    %v201 = vld [vmem:[#allocation5 + $0x400] sm:$0xff]
    %v202 = vld [vmem:[#allocation5 + $0x408] sm:$0xff]
    %v203 = vld [vmem:[#allocation5 + $0x410] sm:$0xff]
    %v204 = vld [vmem:[#allocation5 + $0x418] sm:$0xff]
    %v205 = vld [vmem:[#allocation5 + $0x420] sm:$0xff]
    %v206 = vld [vmem:[#allocation5 + $0x428] sm:$0xff]
    %v207 = vld [vmem:[#allocation5 + $0x430] sm:$0xff]
    %v208 = vld [vmem:[#allocation5 + $0x438] sm:$0xff]
    %v209 = vld [vmem:[#allocation5 + $0x440] sm:$0xff]
    %v210 = vld [vmem:[#allocation5 + $0x448] sm:$0xff]
    %v211 = vld [vmem:[#allocation5 + $0x450] sm:$0xff]
    %v212 = vld [vmem:[#allocation5 + $0x458] sm:$0xff]
    %v213 = vld [vmem:[#allocation5 + $0x460] sm:$0xff]
    %v214 = vld [vmem:[#allocation5 + $0x468] sm:$0xff]
    %v215 = vld [vmem:[#allocation5 + $0x470] sm:$0xff]
    %v216 = vld [vmem:[#allocation5 + $0x478] sm:$0xff]
    %v217 = vld [vmem:[#allocation5 + $0x480] sm:$0xff]
    %v218 = vld [vmem:[#allocation5 + $0x488] sm:$0xff]
    %v219 = vld [vmem:[#allocation5 + $0x490] sm:$0xff]
    %v220 = vld [vmem:[#allocation5 + $0x498] sm:$0xff]
    %v221 = vld [vmem:[#allocation5 + $0x4a0] sm:$0xff]
    %v222 = vld [vmem:[#allocation5 + $0x4a8] sm:$0xff]
    %v223 = vld [vmem:[#allocation5 + $0x4b0] sm:$0xff]
    %v224 = vld [vmem:[#allocation5 + $0x4b8] sm:$0xff]
    %v225 = vld [vmem:[#allocation5 + $0x4c0] sm:$0xff]
    %v226 = vld [vmem:[#allocation5 + $0x4c8] sm:$0xff]
    %v227 = vld [vmem:[#allocation5 + $0x4d0] sm:$0xff]
    %v228 = vld [vmem:[#allocation5 + $0x4d8] sm:$0xff]
    %v229 = vld [vmem:[#allocation5 + $0x4e0] sm:$0xff]
    %v230 = vld [vmem:[#allocation5 + $0x4e8] sm:$0xff]
    %v231 = vld [vmem:[#allocation5 + $0x4f0] sm:$0xff]
    %v232 = vld [vmem:[#allocation5 + $0x4f8] sm:$0xff]
    %v233 = vld [vmem:[#allocation5 + $0x500] sm:$0xff]
    %v234 = vld [vmem:[#allocation5 + $0x508] sm:$0xff]
    %v235 = vld [vmem:[#allocation5 + $0x510] sm:$0xff]
    %v236 = vld [vmem:[#allocation5 + $0x518] sm:$0xff]
    %v237 = vld [vmem:[#allocation5 + $0x520] sm:$0xff]
    %v238 = vld [vmem:[#allocation5 + $0x528] sm:$0xff]
    %v239 = vld [vmem:[#allocation5 + $0x530] sm:$0xff]
    %v240 = vld [vmem:[#allocation5 + $0x538] sm:$0xff]
    %v241 = vld [vmem:[#allocation5 + $0x540] sm:$0xff]
    %v242 = vld [vmem:[#allocation5 + $0x548] sm:$0xff]
    %v243 = vld [vmem:[#allocation5 + $0x550] sm:$0xff]
    %v244 = vld [vmem:[#allocation5 + $0x558] sm:$0xff]
    %v245 = vld [vmem:[#allocation5 + $0x560] sm:$0xff]
    %v246 = vld [vmem:[#allocation5 + $0x568] sm:$0xff]
    %v247 = vld [vmem:[#allocation5 + $0x570] sm:$0xff]
    %v248 = vld [vmem:[#allocation5 + $0x578] sm:$0xff]
    %v249 = vld [vmem:[#allocation5 + $0x580] sm:$0xff]
    %v250 = vld [vmem:[#allocation5 + $0x588] sm:$0xff]
    %v251 = vld [vmem:[#allocation5 + $0x590] sm:$0xff]
    %v252 = vld [vmem:[#allocation5 + $0x598] sm:$0xff]
    %v253 = vld [vmem:[#allocation5 + $0x5a0] sm:$0xff]
    %v254 = vld [vmem:[#allocation5 + $0x5a8] sm:$0xff]
    %v255 = vld [vmem:[#allocation5 + $0x5b0] sm:$0xff]
    %v256 = vld [vmem:[#allocation5 + $0x5b8] sm:$0xff]
    %v257 = vld [vmem:[#allocation5 + $0x5c0] sm:$0xff]
    %v258 = vld [vmem:[#allocation5 + $0x5c8] sm:$0xff]
    %v259 = vld [vmem:[#allocation5 + $0x5d0] sm:$0xff]
    %v260 = vld [vmem:[#allocation5 + $0x5d8] sm:$0xff]
    %v261 = vld [vmem:[#allocation5 + $0x5e0] sm:$0xff]
    %v262 = vld [vmem:[#allocation5 + $0x5e8] sm:$0xff]
    %v263 = vld [vmem:[#allocation5 + $0x5f0] sm:$0xff]
    %v264 = vld [vmem:[#allocation5 + $0x5f8] sm:$0xff]
    %v265 = vld [vmem:[%s2] sm:$0xf]
    %v267 = vlaneseq
    %v268 = vshrl.u32 %v267, 7
    %v269 = vsub.s32 0, %v268
    %v270 = vrot.slane %v265, %v269
    %v271 = vlaneseq
    %v272 = vshrl.u32 %v271, 7
    %v273 = vsub.s32 1, %v272
    %v274 = vrot.slane %v265, %v273
    %v275 = vlaneseq
    %v276 = vshrl.u32 %v275, 7
    %v277 = vsub.s32 2, %v276
    %v278 = vrot.slane %v265, %v277
    %v279 = vlaneseq
    %v280 = vshrl.u32 %v279, 7
    %v281 = vsub.s32 3, %v280
    %v282 = vrot.slane %v265, %v281
    %v479 = vunpack.c.l.b16 %v73
    %v480 = vunpack.c.h.b16 %v73
    %v481 = vunpack.c.l.b16 %v74
    %v482 = vunpack.c.h.b16 %v74
    %v483 = vunpack.c.l.b16 %v75
    %v484 = vunpack.c.h.b16 %v75
    %v485 = vunpack.c.l.b16 %v76
    %v486 = vunpack.c.h.b16 %v76
    %v487 = vunpack.c.l.b16 %v77
    %v488 = vunpack.c.h.b16 %v77
    %v489 = vunpack.c.l.b16 %v78
    %v490 = vunpack.c.h.b16 %v78
    %v491 = vunpack.c.l.b16 %v79
    %v492 = vunpack.c.h.b16 %v79
    %v493 = vunpack.c.l.b16 %v80
    %v494 = vunpack.c.h.b16 %v80
    %v495 = vunpack.c.l.b16 %v81
    %v496 = vunpack.c.h.b16 %v81
    %v497 = vunpack.c.l.b16 %v82
    %v498 = vunpack.c.h.b16 %v82
    %v499 = vunpack.c.l.b16 %v83
    %v500 = vunpack.c.h.b16 %v83
    %v501 = vunpack.c.l.b16 %v84
    %v502 = vunpack.c.h.b16 %v84
    %v503 = vunpack.c.l.b16 %v85
    %v504 = vunpack.c.h.b16 %v85
    %v505 = vunpack.c.l.b16 %v86
    %v506 = vunpack.c.h.b16 %v86
    %v507 = vunpack.c.l.b16 %v87
    %v508 = vunpack.c.h.b16 %v87
    %v509 = vunpack.c.l.b16 %v88
    %v510 = vunpack.c.h.b16 %v88
    %v511 = vunpack.c.l.b16 %v89
    %v512 = vunpack.c.h.b16 %v89
    %v513 = vunpack.c.l.b16 %v90
    %v514 = vunpack.c.h.b16 %v90
    %v515 = vunpack.c.l.b16 %v91
    %v516 = vunpack.c.h.b16 %v91
    %v517 = vunpack.c.l.b16 %v92
    %v518 = vunpack.c.h.b16 %v92
    %v519 = vunpack.c.l.b16 %v93
    %v520 = vunpack.c.h.b16 %v93
    %v521 = vunpack.c.l.b16 %v94
    %v522 = vunpack.c.h.b16 %v94
    %v523 = vunpack.c.l.b16 %v95
    %v524 = vunpack.c.h.b16 %v95
    %v525 = vunpack.c.l.b16 %v96
    %v526 = vunpack.c.h.b16 %v96
    %v527 = vunpack.c.l.b16 %v97
    %v528 = vunpack.c.h.b16 %v97
    %v529 = vunpack.c.l.b16 %v98
    %v530 = vunpack.c.h.b16 %v98
    %v531 = vunpack.c.l.b16 %v99
    %v532 = vunpack.c.h.b16 %v99
    %v533 = vunpack.c.l.b16 %v100
    %v534 = vunpack.c.h.b16 %v100
    %v535 = vunpack.c.l.b16 %v101
    %v536 = vunpack.c.h.b16 %v101
    %v537 = vunpack.c.l.b16 %v102
    %v538 = vunpack.c.h.b16 %v102
    %v539 = vunpack.c.l.b16 %v103
    %v540 = vunpack.c.h.b16 %v103
    %v541 = vunpack.c.l.b16 %v104
    %v542 = vunpack.c.h.b16 %v104
    %v543 = vunpack.c.l.b16 %v105
    %v544 = vunpack.c.h.b16 %v105
    %v545 = vunpack.c.l.b16 %v106
    %v546 = vunpack.c.h.b16 %v106
    %v547 = vunpack.c.l.b16 %v107
    %v548 = vunpack.c.h.b16 %v107
    %v549 = vunpack.c.l.b16 %v108
    %v550 = vunpack.c.h.b16 %v108
    %v551 = vunpack.c.l.b16 %v109
    %v552 = vunpack.c.h.b16 %v109
    %v553 = vunpack.c.l.b16 %v110
    %v554 = vunpack.c.h.b16 %v110
    %v555 = vunpack.c.l.b16 %v111
    %v556 = vunpack.c.h.b16 %v111
    %v557 = vunpack.c.l.b16 %v112
    %v558 = vunpack.c.h.b16 %v112
    %v559 = vunpack.c.l.b16 %v113
    %v560 = vunpack.c.h.b16 %v113
    %v561 = vunpack.c.l.b16 %v114
    %v562 = vunpack.c.h.b16 %v114
    %v563 = vunpack.c.l.b16 %v115
    %v564 = vunpack.c.h.b16 %v115
    %v565 = vunpack.c.l.b16 %v116
    %v566 = vunpack.c.h.b16 %v116
    %v567 = vunpack.c.l.b16 %v117
    %v568 = vunpack.c.h.b16 %v117
    %v569 = vunpack.c.l.b16 %v118
    %v570 = vunpack.c.h.b16 %v118
    %v571 = vunpack.c.l.b16 %v119
    %v572 = vunpack.c.h.b16 %v119
    %v573 = vunpack.c.l.b16 %v120
    %v574 = vunpack.c.h.b16 %v120
    %v575 = vunpack.c.l.b16 %v121
    %v576 = vunpack.c.h.b16 %v121
    %v577 = vunpack.c.l.b16 %v122
    %v578 = vunpack.c.h.b16 %v122
    %v579 = vunpack.c.l.b16 %v123
    %v580 = vunpack.c.h.b16 %v123
    %v581 = vunpack.c.l.b16 %v124
    %v582 = vunpack.c.h.b16 %v124
    %v583 = vunpack.c.l.b16 %v125
    %v584 = vunpack.c.h.b16 %v125
    %v585 = vunpack.c.l.b16 %v126
    %v586 = vunpack.c.h.b16 %v126
    %v587 = vunpack.c.l.b16 %v127
    %v588 = vunpack.c.h.b16 %v127
    %v589 = vunpack.c.l.b16 %v128
    %v590 = vunpack.c.h.b16 %v128
    %v591 = vunpack.c.l.b16 %v129
    %v592 = vunpack.c.h.b16 %v129
    %v593 = vunpack.c.l.b16 %v130
    %v594 = vunpack.c.h.b16 %v130
    %v595 = vunpack.c.l.b16 %v131
    %v596 = vunpack.c.h.b16 %v131
    %v597 = vunpack.c.l.b16 %v132
    %v598 = vunpack.c.h.b16 %v132
    %v599 = vunpack.c.l.b16 %v133
    %v600 = vunpack.c.h.b16 %v133
    %v601 = vunpack.c.l.b16 %v134
    %v602 = vunpack.c.h.b16 %v134
    %v603 = vunpack.c.l.b16 %v135
    %v604 = vunpack.c.h.b16 %v135
    %v605 = vunpack.c.l.b16 %v136
    %v606 = vunpack.c.h.b16 %v136
    %v607 = vunpack.c.l.b16 %v137
    %v608 = vunpack.c.h.b16 %v137
    %v609 = vunpack.c.l.b16 %v138
    %v610 = vunpack.c.h.b16 %v138
    %v611 = vunpack.c.l.b16 %v139
    %v612 = vunpack.c.h.b16 %v139
    %v613 = vunpack.c.l.b16 %v140
    %v614 = vunpack.c.h.b16 %v140
    %v615 = vunpack.c.l.b16 %v141
    %v616 = vunpack.c.h.b16 %v141
    %v617 = vunpack.c.l.b16 %v142
    %v618 = vunpack.c.h.b16 %v142
    %v619 = vunpack.c.l.b16 %v143
    %v620 = vunpack.c.h.b16 %v143
    %v621 = vunpack.c.l.b16 %v144
    %v622 = vunpack.c.h.b16 %v144
    %v623 = vunpack.c.l.b16 %v145
    %v624 = vunpack.c.h.b16 %v145
    %v625 = vunpack.c.l.b16 %v146
    %v626 = vunpack.c.h.b16 %v146
    %v627 = vunpack.c.l.b16 %v147
    %v628 = vunpack.c.h.b16 %v147
    %v629 = vunpack.c.l.b16 %v148
    %v630 = vunpack.c.h.b16 %v148
    %v631 = vunpack.c.l.b16 %v149
    %v632 = vunpack.c.h.b16 %v149
    %v633 = vunpack.c.l.b16 %v150
    %v634 = vunpack.c.h.b16 %v150
    %v635 = vunpack.c.l.b16 %v151
    %v636 = vunpack.c.h.b16 %v151
    %v637 = vunpack.c.l.b16 %v152
    %v638 = vunpack.c.h.b16 %v152
    %v639 = vunpack.c.l.b16 %v153
    %v640 = vunpack.c.h.b16 %v153
    %v641 = vunpack.c.l.b16 %v154
    %v642 = vunpack.c.h.b16 %v154
    %v643 = vunpack.c.l.b16 %v155
    %v644 = vunpack.c.h.b16 %v155
    %v645 = vunpack.c.l.b16 %v156
    %v646 = vunpack.c.h.b16 %v156
    %v647 = vunpack.c.l.b16 %v157
    %v648 = vunpack.c.h.b16 %v157
    %v649 = vunpack.c.l.b16 %v158
    %v650 = vunpack.c.h.b16 %v158
    %v651 = vunpack.c.l.b16 %v159
    %v652 = vunpack.c.h.b16 %v159
    %v653 = vunpack.c.l.b16 %v160
    %v654 = vunpack.c.h.b16 %v160
    %v655 = vunpack.c.l.b16 %v161
    %v656 = vunpack.c.h.b16 %v161
    %v657 = vunpack.c.l.b16 %v162
    %v658 = vunpack.c.h.b16 %v162
    %v659 = vunpack.c.l.b16 %v163
    %v660 = vunpack.c.h.b16 %v163
    %v661 = vunpack.c.l.b16 %v164
    %v662 = vunpack.c.h.b16 %v164
    %v663 = vunpack.c.l.b16 %v165
    %v664 = vunpack.c.h.b16 %v165
    %v665 = vunpack.c.l.b16 %v166
    %v666 = vunpack.c.h.b16 %v166
    %v667 = vunpack.c.l.b16 %v167
    %v668 = vunpack.c.h.b16 %v167
    %v669 = vunpack.c.l.b16 %v168
    %v670 = vunpack.c.h.b16 %v168
    %v671 = vunpack.c.l.b16 %v169
    %v672 = vunpack.c.h.b16 %v169
    %v673 = vunpack.c.l.b16 %v170
    %v674 = vunpack.c.h.b16 %v170
    %v675 = vunpack.c.l.b16 %v171
    %v676 = vunpack.c.h.b16 %v171
    %v677 = vunpack.c.l.b16 %v172
    %v678 = vunpack.c.h.b16 %v172
    %v679 = vunpack.c.l.b16 %v173
    %v680 = vunpack.c.h.b16 %v173
    %v681 = vunpack.c.l.b16 %v174
    %v682 = vunpack.c.h.b16 %v174
    %v683 = vunpack.c.l.b16 %v175
    %v684 = vunpack.c.h.b16 %v175
    %v685 = vunpack.c.l.b16 %v176
    %v686 = vunpack.c.h.b16 %v176
    %v687 = vunpack.c.l.b16 %v177
    %v688 = vunpack.c.h.b16 %v177
    %v689 = vunpack.c.l.b16 %v178
    %v690 = vunpack.c.h.b16 %v178
    %v691 = vunpack.c.l.b16 %v179
    %v692 = vunpack.c.h.b16 %v179
    %v693 = vunpack.c.l.b16 %v180
    %v694 = vunpack.c.h.b16 %v180
    %v695 = vunpack.c.l.b16 %v181
    %v696 = vunpack.c.h.b16 %v181
    %v697 = vunpack.c.l.b16 %v182
    %v698 = vunpack.c.h.b16 %v182
    %v699 = vunpack.c.l.b16 %v183
    %v700 = vunpack.c.h.b16 %v183
    %v701 = vunpack.c.l.b16 %v184
    %v702 = vunpack.c.h.b16 %v184
    %v703 = vunpack.c.l.b16 %v185
    %v704 = vunpack.c.h.b16 %v185
    %v705 = vunpack.c.l.b16 %v186
    %v706 = vunpack.c.h.b16 %v186
    %v707 = vunpack.c.l.b16 %v187
    %v708 = vunpack.c.h.b16 %v187
    %v709 = vunpack.c.l.b16 %v188
    %v710 = vunpack.c.h.b16 %v188
    %v711 = vunpack.c.l.b16 %v189
    %v712 = vunpack.c.h.b16 %v189
    %v713 = vunpack.c.l.b16 %v190
    %v714 = vunpack.c.h.b16 %v190
    %v715 = vunpack.c.l.b16 %v191
    %v716 = vunpack.c.h.b16 %v191
    %v717 = vunpack.c.l.b16 %v192
    %v718 = vunpack.c.h.b16 %v192
    %v719 = vunpack.c.l.b16 %v193
    %v720 = vunpack.c.h.b16 %v193
    %v721 = vunpack.c.l.b16 %v194
    %v722 = vunpack.c.h.b16 %v194
    %v723 = vunpack.c.l.b16 %v195
    %v724 = vunpack.c.h.b16 %v195
    %v725 = vunpack.c.l.b16 %v196
    %v726 = vunpack.c.h.b16 %v196
    %v727 = vunpack.c.l.b16 %v197
    %v728 = vunpack.c.h.b16 %v197
    %v729 = vunpack.c.l.b16 %v198
    %v730 = vunpack.c.h.b16 %v198
    %v731 = vunpack.c.l.b16 %v199
    %v732 = vunpack.c.h.b16 %v199
    %v733 = vunpack.c.l.b16 %v200
    %v734 = vunpack.c.h.b16 %v200
    %v735 = vunpack.c.l.b16 %v201
    %v736 = vunpack.c.h.b16 %v201
    %v737 = vunpack.c.l.b16 %v202
    %v738 = vunpack.c.h.b16 %v202
    %v739 = vunpack.c.l.b16 %v203
    %v740 = vunpack.c.h.b16 %v203
    %v741 = vunpack.c.l.b16 %v204
    %v742 = vunpack.c.h.b16 %v204
    %v743 = vunpack.c.l.b16 %v205
    %v744 = vunpack.c.h.b16 %v205
    %v745 = vunpack.c.l.b16 %v206
    %v746 = vunpack.c.h.b16 %v206
    %v747 = vunpack.c.l.b16 %v207
    %v748 = vunpack.c.h.b16 %v207
    %v749 = vunpack.c.l.b16 %v208
    %v750 = vunpack.c.h.b16 %v208
    %v751 = vunpack.c.l.b16 %v209
    %v752 = vunpack.c.h.b16 %v209
    %v753 = vunpack.c.l.b16 %v210
    %v754 = vunpack.c.h.b16 %v210
    %v755 = vunpack.c.l.b16 %v211
    %v756 = vunpack.c.h.b16 %v211
    %v757 = vunpack.c.l.b16 %v212
    %v758 = vunpack.c.h.b16 %v212
    %v759 = vunpack.c.l.b16 %v213
    %v760 = vunpack.c.h.b16 %v213
    %v761 = vunpack.c.l.b16 %v214
    %v762 = vunpack.c.h.b16 %v214
    %v763 = vunpack.c.l.b16 %v215
    %v764 = vunpack.c.h.b16 %v215
    %v765 = vunpack.c.l.b16 %v216
    %v766 = vunpack.c.h.b16 %v216
    %v767 = vunpack.c.l.b16 %v217
    %v768 = vunpack.c.h.b16 %v217
    %v769 = vunpack.c.l.b16 %v218
    %v770 = vunpack.c.h.b16 %v218
    %v771 = vunpack.c.l.b16 %v219
    %v772 = vunpack.c.h.b16 %v219
    %v773 = vunpack.c.l.b16 %v220
    %v774 = vunpack.c.h.b16 %v220
    %v775 = vunpack.c.l.b16 %v221
    %v776 = vunpack.c.h.b16 %v221
    %v777 = vunpack.c.l.b16 %v222
    %v778 = vunpack.c.h.b16 %v222
    %v779 = vunpack.c.l.b16 %v223
    %v780 = vunpack.c.h.b16 %v223
    %v781 = vunpack.c.l.b16 %v224
    %v782 = vunpack.c.h.b16 %v224
    %v783 = vunpack.c.l.b16 %v225
    %v784 = vunpack.c.h.b16 %v225
    %v785 = vunpack.c.l.b16 %v226
    %v786 = vunpack.c.h.b16 %v226
    %v787 = vunpack.c.l.b16 %v227
    %v788 = vunpack.c.h.b16 %v227
    %v789 = vunpack.c.l.b16 %v228
    %v790 = vunpack.c.h.b16 %v228
    %v791 = vunpack.c.l.b16 %v229
    %v792 = vunpack.c.h.b16 %v229
    %v793 = vunpack.c.l.b16 %v230
    %v794 = vunpack.c.h.b16 %v230
    %v795 = vunpack.c.l.b16 %v231
    %v796 = vunpack.c.h.b16 %v231
    %v797 = vunpack.c.l.b16 %v232
    %v798 = vunpack.c.h.b16 %v232
    %v799 = vunpack.c.l.b16 %v233
    %v800 = vunpack.c.h.b16 %v233
    %v801 = vunpack.c.l.b16 %v234
    %v802 = vunpack.c.h.b16 %v234
    %v803 = vunpack.c.l.b16 %v235
    %v804 = vunpack.c.h.b16 %v235
    %v805 = vunpack.c.l.b16 %v236
    %v806 = vunpack.c.h.b16 %v236
    %v807 = vunpack.c.l.b16 %v237
    %v808 = vunpack.c.h.b16 %v237
    %v809 = vunpack.c.l.b16 %v238
    %v810 = vunpack.c.h.b16 %v238
    %v811 = vunpack.c.l.b16 %v239
    %v812 = vunpack.c.h.b16 %v239
    %v813 = vunpack.c.l.b16 %v240
    %v814 = vunpack.c.h.b16 %v240
    %v815 = vunpack.c.l.b16 %v241
    %v816 = vunpack.c.h.b16 %v241
    %v817 = vunpack.c.l.b16 %v242
    %v818 = vunpack.c.h.b16 %v242
    %v819 = vunpack.c.l.b16 %v243
    %v820 = vunpack.c.h.b16 %v243
    %v821 = vunpack.c.l.b16 %v244
    %v822 = vunpack.c.h.b16 %v244
    %v823 = vunpack.c.l.b16 %v245
    %v824 = vunpack.c.h.b16 %v245
    %v825 = vunpack.c.l.b16 %v246
    %v826 = vunpack.c.h.b16 %v246
    %v827 = vunpack.c.l.b16 %v247
    %v828 = vunpack.c.h.b16 %v247
    %v829 = vunpack.c.l.b16 %v248
    %v830 = vunpack.c.h.b16 %v248
    %v831 = vunpack.c.l.b16 %v249
    %v832 = vunpack.c.h.b16 %v249
    %v833 = vunpack.c.l.b16 %v250
    %v834 = vunpack.c.h.b16 %v250
    %v835 = vunpack.c.l.b16 %v251
    %v836 = vunpack.c.h.b16 %v251
    %v837 = vunpack.c.l.b16 %v252
    %v838 = vunpack.c.h.b16 %v252
    %v839 = vunpack.c.l.b16 %v253
    %v840 = vunpack.c.h.b16 %v253
    %v841 = vunpack.c.l.b16 %v254
    %v842 = vunpack.c.h.b16 %v254
    %v843 = vunpack.c.l.b16 %v255
    %v844 = vunpack.c.h.b16 %v255
    %v845 = vunpack.c.l.b16 %v256
    %v846 = vunpack.c.h.b16 %v256
    %v847 = vunpack.c.l.b16 %v257
    %v848 = vunpack.c.h.b16 %v257
    %v849 = vunpack.c.l.b16 %v258
    %v850 = vunpack.c.h.b16 %v258
    %v851 = vunpack.c.l.b16 %v259
    %v852 = vunpack.c.h.b16 %v259
    %v853 = vunpack.c.l.b16 %v260
    %v854 = vunpack.c.h.b16 %v260
    %v855 = vunpack.c.l.b16 %v261
    %v856 = vunpack.c.h.b16 %v261
    %v857 = vunpack.c.l.b16 %v262
    %v858 = vunpack.c.h.b16 %v262
    %v859 = vunpack.c.l.b16 %v263
    %v860 = vunpack.c.h.b16 %v263
    %v861 = vunpack.c.l.b16 %v264
    %v862 = vunpack.c.h.b16 %v264
    %v863 = vpack.c.b16 %v483, %v479
    %v864 = vpack.c.b16 %v484, %v480
    %v865 = vpack.c.b16 %v485, %v481
    %v866 = vpack.c.b16 %v486, %v482
    %v867 = vpack.c.b16 %v491, %v487
    %v868 = vpack.c.b16 %v492, %v488
    %v869 = vpack.c.b16 %v493, %v489
    %v870 = vpack.c.b16 %v494, %v490
    %v871 = vpack.c.b16 %v499, %v495
    %v872 = vpack.c.b16 %v500, %v496
    %v873 = vpack.c.b16 %v501, %v497
    %v874 = vpack.c.b16 %v502, %v498
    %v875 = vpack.c.b16 %v507, %v503
    %v876 = vpack.c.b16 %v508, %v504
    %v877 = vpack.c.b16 %v509, %v505
    %v878 = vpack.c.b16 %v510, %v506
    %v879 = vpack.c.b16 %v515, %v511
    %v880 = vpack.c.b16 %v516, %v512
    %v881 = vpack.c.b16 %v517, %v513
    %v882 = vpack.c.b16 %v518, %v514
    %v883 = vpack.c.b16 %v523, %v519
    %v884 = vpack.c.b16 %v524, %v520
    %v885 = vpack.c.b16 %v525, %v521
    %v886 = vpack.c.b16 %v526, %v522
    %v887 = vpack.c.b16 %v531, %v527
    %v888 = vpack.c.b16 %v532, %v528
    %v889 = vpack.c.b16 %v533, %v529
    %v890 = vpack.c.b16 %v534, %v530
    %v891 = vpack.c.b16 %v539, %v535
    %v892 = vpack.c.b16 %v540, %v536
    %v893 = vpack.c.b16 %v541, %v537
    %v894 = vpack.c.b16 %v542, %v538
    %v895 = vpack.c.b16 %v547, %v543
    %v896 = vpack.c.b16 %v548, %v544
    %v897 = vpack.c.b16 %v549, %v545
    %v898 = vpack.c.b16 %v550, %v546
    %v899 = vpack.c.b16 %v555, %v551
    %v900 = vpack.c.b16 %v556, %v552
    %v901 = vpack.c.b16 %v557, %v553
    %v902 = vpack.c.b16 %v558, %v554
    %v903 = vpack.c.b16 %v563, %v559
    %v904 = vpack.c.b16 %v564, %v560
    %v905 = vpack.c.b16 %v565, %v561
    %v906 = vpack.c.b16 %v566, %v562
    %v907 = vpack.c.b16 %v571, %v567
    %v908 = vpack.c.b16 %v572, %v568
    %v909 = vpack.c.b16 %v573, %v569
    %v910 = vpack.c.b16 %v574, %v570
    %v911 = vpack.c.b16 %v579, %v575
    %v912 = vpack.c.b16 %v580, %v576
    %v913 = vpack.c.b16 %v581, %v577
    %v914 = vpack.c.b16 %v582, %v578
    %v915 = vpack.c.b16 %v587, %v583
    %v916 = vpack.c.b16 %v588, %v584
    %v917 = vpack.c.b16 %v589, %v585
    %v918 = vpack.c.b16 %v590, %v586
    %v919 = vpack.c.b16 %v595, %v591
    %v920 = vpack.c.b16 %v596, %v592
    %v921 = vpack.c.b16 %v597, %v593
    %v922 = vpack.c.b16 %v598, %v594
    %v923 = vpack.c.b16 %v603, %v599
    %v924 = vpack.c.b16 %v604, %v600
    %v925 = vpack.c.b16 %v605, %v601
    %v926 = vpack.c.b16 %v606, %v602
    %v927 = vpack.c.b16 %v611, %v607
    %v928 = vpack.c.b16 %v612, %v608
    %v929 = vpack.c.b16 %v613, %v609
    %v930 = vpack.c.b16 %v614, %v610
    %v931 = vpack.c.b16 %v619, %v615
    %v932 = vpack.c.b16 %v620, %v616
    %v933 = vpack.c.b16 %v621, %v617
    %v934 = vpack.c.b16 %v622, %v618
    %v935 = vpack.c.b16 %v627, %v623
    %v936 = vpack.c.b16 %v628, %v624
    %v937 = vpack.c.b16 %v629, %v625
    %v938 = vpack.c.b16 %v630, %v626
    %v939 = vpack.c.b16 %v635, %v631
    %v940 = vpack.c.b16 %v636, %v632
    %v941 = vpack.c.b16 %v637, %v633
    %v942 = vpack.c.b16 %v638, %v634
    %v943 = vpack.c.b16 %v643, %v639
    %v944 = vpack.c.b16 %v644, %v640
    %v945 = vpack.c.b16 %v645, %v641
    %v946 = vpack.c.b16 %v646, %v642
    %v947 = vpack.c.b16 %v651, %v647
    %v948 = vpack.c.b16 %v652, %v648
    %v949 = vpack.c.b16 %v653, %v649
    %v950 = vpack.c.b16 %v654, %v650
    %v951 = vpack.c.b16 %v659, %v655
    %v952 = vpack.c.b16 %v660, %v656
    %v953 = vpack.c.b16 %v661, %v657
    %v954 = vpack.c.b16 %v662, %v658
    %v955 = vpack.c.b16 %v667, %v663
    %v956 = vpack.c.b16 %v668, %v664
    %v957 = vpack.c.b16 %v669, %v665
    %v958 = vpack.c.b16 %v670, %v666
    %v959 = vpack.c.b16 %v675, %v671
    %v960 = vpack.c.b16 %v676, %v672
    %v961 = vpack.c.b16 %v677, %v673
    %v962 = vpack.c.b16 %v678, %v674
    %v963 = vpack.c.b16 %v683, %v679
    %v964 = vpack.c.b16 %v684, %v680
    %v965 = vpack.c.b16 %v685, %v681
    %v966 = vpack.c.b16 %v686, %v682
    %v967 = vpack.c.b16 %v691, %v687
    %v968 = vpack.c.b16 %v692, %v688
    %v969 = vpack.c.b16 %v693, %v689
    %v970 = vpack.c.b16 %v694, %v690
    %v971 = vpack.c.b16 %v699, %v695
    %v972 = vpack.c.b16 %v700, %v696
    %v973 = vpack.c.b16 %v701, %v697
    %v974 = vpack.c.b16 %v702, %v698
    %v975 = vpack.c.b16 %v707, %v703
    %v976 = vpack.c.b16 %v708, %v704
    %v977 = vpack.c.b16 %v709, %v705
    %v978 = vpack.c.b16 %v710, %v706
    %v979 = vpack.c.b16 %v715, %v711
    %v980 = vpack.c.b16 %v716, %v712
    %v981 = vpack.c.b16 %v717, %v713
    %v982 = vpack.c.b16 %v718, %v714
    %v983 = vpack.c.b16 %v723, %v719
    %v984 = vpack.c.b16 %v724, %v720
    %v985 = vpack.c.b16 %v725, %v721
    %v986 = vpack.c.b16 %v726, %v722
    %v987 = vpack.c.b16 %v731, %v727
    %v988 = vpack.c.b16 %v732, %v728
    %v989 = vpack.c.b16 %v733, %v729
    %v990 = vpack.c.b16 %v734, %v730
    %v991 = vpack.c.b16 %v739, %v735
    %v992 = vpack.c.b16 %v740, %v736
    %v993 = vpack.c.b16 %v741, %v737
    %v994 = vpack.c.b16 %v742, %v738
    %v995 = vpack.c.b16 %v747, %v743
    %v996 = vpack.c.b16 %v748, %v744
    %v997 = vpack.c.b16 %v749, %v745
    %v998 = vpack.c.b16 %v750, %v746
    %v999 = vpack.c.b16 %v755, %v751
    %v1000 = vpack.c.b16 %v756, %v752
    %v1001 = vpack.c.b16 %v757, %v753
    %v1002 = vpack.c.b16 %v758, %v754
    %v1003 = vpack.c.b16 %v763, %v759
    %v1004 = vpack.c.b16 %v764, %v760
    %v1005 = vpack.c.b16 %v765, %v761
    %v1006 = vpack.c.b16 %v766, %v762
    %v1007 = vpack.c.b16 %v771, %v767
    %v1008 = vpack.c.b16 %v772, %v768
    %v1009 = vpack.c.b16 %v773, %v769
    %v1010 = vpack.c.b16 %v774, %v770
    %v1011 = vpack.c.b16 %v779, %v775
    %v1012 = vpack.c.b16 %v780, %v776
    %v1013 = vpack.c.b16 %v781, %v777
    %v1014 = vpack.c.b16 %v782, %v778
    %v1015 = vpack.c.b16 %v787, %v783
    %v1016 = vpack.c.b16 %v788, %v784
    %v1017 = vpack.c.b16 %v789, %v785
    %v1018 = vpack.c.b16 %v790, %v786
    %v1019 = vpack.c.b16 %v795, %v791
    %v1020 = vpack.c.b16 %v796, %v792
    %v1021 = vpack.c.b16 %v797, %v793
    %v1022 = vpack.c.b16 %v798, %v794
    %v1023 = vpack.c.b16 %v803, %v799
    %v1024 = vpack.c.b16 %v804, %v800
    %v1025 = vpack.c.b16 %v805, %v801
    %v1026 = vpack.c.b16 %v806, %v802
    %v1027 = vpack.c.b16 %v811, %v807
    %v1028 = vpack.c.b16 %v812, %v808
    %v1029 = vpack.c.b16 %v813, %v809
    %v1030 = vpack.c.b16 %v814, %v810
    %v1031 = vpack.c.b16 %v819, %v815
    %v1032 = vpack.c.b16 %v820, %v816
    %v1033 = vpack.c.b16 %v821, %v817
    %v1034 = vpack.c.b16 %v822, %v818
    %v1035 = vpack.c.b16 %v827, %v823
    %v1036 = vpack.c.b16 %v828, %v824
    %v1037 = vpack.c.b16 %v829, %v825
    %v1038 = vpack.c.b16 %v830, %v826
    %v1039 = vpack.c.b16 %v835, %v831
    %v1040 = vpack.c.b16 %v836, %v832
    %v1041 = vpack.c.b16 %v837, %v833
    %v1042 = vpack.c.b16 %v838, %v834
    %v1043 = vpack.c.b16 %v843, %v839
    %v1044 = vpack.c.b16 %v844, %v840
    %v1045 = vpack.c.b16 %v845, %v841
    %v1046 = vpack.c.b16 %v846, %v842
    %v1047 = vpack.c.b16 %v851, %v847
    %v1048 = vpack.c.b16 %v852, %v848
    %v1049 = vpack.c.b16 %v853, %v849
    %v1050 = vpack.c.b16 %v854, %v850
    %v1051 = vpack.c.b16 %v859, %v855
    %v1052 = vpack.c.b16 %v860, %v856
    %v1053 = vpack.c.b16 %v861, %v857
    %v1054 = vpack.c.b16 %v862, %v858
    %1247 = vmatprep.subr.bf16.mxu0 %v864
    %1248 = vmatpush1.bf16.msra.mxu0 %v863
    %1249 = vmatprep.subr.bf16.mxu0 %v868
    %1250 = vmatpush1.bf16.msra.mxu0 %v867
    %1251 = vmatprep.subr.bf16.mxu0 %v872
    %1252 = vmatpush1.bf16.msra.mxu0 %v871
    %1253 = vmatprep.subr.bf16.mxu0 %v876
    %1254 = vmatpush1.bf16.msra.mxu0 %v875
    %1255 = vmatprep.subr.bf16.mxu0 %v880
    %1256 = vmatpush1.bf16.msra.mxu0 %v879
    %1257 = vmatprep.subr.bf16.mxu0 %v884
    %1258 = vmatpush1.bf16.msra.mxu0 %v883
    %1259 = vmatprep.subr.bf16.mxu0 %v888
    %1260 = vmatpush1.bf16.msra.mxu0 %v887
    %1261 = vmatprep.subr.bf16.mxu0 %v892
    %1262 = vmatpush1.bf16.msra.mxu0 %v891
    %1263 = vmatprep.subr.bf16.mxu0 %v896
    %1264 = vmatpush1.bf16.msra.mxu0 %v895
    %1265 = vmatprep.subr.bf16.mxu0 %v900
    %1266 = vmatpush1.bf16.msra.mxu0 %v899
    %1267 = vmatprep.subr.bf16.mxu0 %v904
    %1268 = vmatpush1.bf16.msra.mxu0 %v903
    %1269 = vmatprep.subr.bf16.mxu0 %v908
    %1270 = vmatpush1.bf16.msra.mxu0 %v907
    %1271 = vmatprep.subr.bf16.mxu0 %v912
    %1272 = vmatpush1.bf16.msra.mxu0 %v911
    %1273 = vmatprep.subr.bf16.mxu0 %v916
    %1274 = vmatpush1.bf16.msra.mxu0 %v915
    %1275 = vmatprep.subr.bf16.mxu0 %v920
    %1276 = vmatpush1.bf16.msra.mxu0 %v919
    %1277 = vmatprep.subr.bf16.mxu0 %v924
    %1278 = vmatpush1.bf16.msra.mxu0 %v923
    %1279 = vmatprep.mubr.bf16.mxu0 %v68
    %1280 = vmatmul.mubr.bf16.gmra.mrb[0].mxu0 %v67
    %v1281 = vpop.f32.mrb[0].mxu0
    %v1282 = vadd.f32 %v270, %v1281
    %v1283 = vpop.f32.mrb[0].mxu0
    %v1284 = vadd.f32 %v274, %v1283
    %v1285 = vpop.f32.mrb[0].mxu0
    %v1286 = vpop.f32.mrb[0].mxu0
    %1287 = vdwg.mxu0
    %1288 = vmatprep.subr.bf16.mxu0 %v928
    %1289 = vmatpush1.bf16.msra.mxu0 %v927
    %1290 = vmatprep.subr.bf16.mxu0 %v932
    %1291 = vmatpush1.bf16.msra.mxu0 %v931
    %1292 = vmatprep.subr.bf16.mxu0 %v936
    %1293 = vmatpush1.bf16.msra.mxu0 %v935
    %1294 = vmatprep.subr.bf16.mxu0 %v940
    %1295 = vmatpush1.bf16.msra.mxu0 %v939
    %1296 = vmatprep.subr.bf16.mxu0 %v944
    %1297 = vmatpush1.bf16.msra.mxu0 %v943
    %1298 = vmatprep.subr.bf16.mxu0 %v948
    %1299 = vmatpush1.bf16.msra.mxu0 %v947
    %1300 = vmatprep.subr.bf16.mxu0 %v952
    %1301 = vmatpush1.bf16.msra.mxu0 %v951
    %1302 = vmatprep.subr.bf16.mxu0 %v956
    %1303 = vmatpush1.bf16.msra.mxu0 %v955
    %1304 = vmatprep.subr.bf16.mxu0 %v960
    %1305 = vmatpush1.bf16.msra.mxu0 %v959
    %1306 = vmatprep.subr.bf16.mxu0 %v964
    %1307 = vmatpush1.bf16.msra.mxu0 %v963
    %1308 = vmatprep.subr.bf16.mxu0 %v968
    %1309 = vmatpush1.bf16.msra.mxu0 %v967
    %1310 = vmatprep.subr.bf16.mxu0 %v972
    %1311 = vmatpush1.bf16.msra.mxu0 %v971
    %1312 = vmatprep.subr.bf16.mxu0 %v976
    %1313 = vmatpush1.bf16.msra.mxu0 %v975
    %1314 = vmatprep.subr.bf16.mxu0 %v980
    %1315 = vmatpush1.bf16.msra.mxu0 %v979
    %1316 = vmatprep.subr.bf16.mxu0 %v984
    %1317 = vmatpush1.bf16.msra.mxu0 %v983
    %1318 = vmatprep.subr.bf16.mxu0 %v988
    %1319 = vmatpush1.bf16.msra.mxu0 %v987
    %1320 = vmatprep.mubr.bf16.mxu0 %v70
    %1321 = vmatmul.mubr.bf16.gmra.mrb[0].mxu0 %v69
    %v1322 = vpop.f32.mrb[0].mxu0
    %v1323 = vadd.f32 %v1282, %v1322
    %v1324 = vpop.f32.mrb[0].mxu0
    %v1325 = vadd.f32 %v1284, %v1324
    %v1326 = vpop.f32.mrb[0].mxu0
    %v1327 = vpop.f32.mrb[0].mxu0
    %1328 = vdwg.mxu0
    %1329 = vmatprep.subr.bf16.mxu0 %v992
    %1330 = vmatpush1.bf16.msra.mxu0 %v991
    %1331 = vmatprep.subr.bf16.mxu0 %v996
    %1332 = vmatpush1.bf16.msra.mxu0 %v995
    %1333 = vmatprep.subr.bf16.mxu0 %v1000
    %1334 = vmatpush1.bf16.msra.mxu0 %v999
    %1335 = vmatprep.subr.bf16.mxu0 %v1004
    %1336 = vmatpush1.bf16.msra.mxu0 %v1003
    %1337 = vmatprep.subr.bf16.mxu0 %v1008
    %1338 = vmatpush1.bf16.msra.mxu0 %v1007
    %1339 = vmatprep.subr.bf16.mxu0 %v1012
    %1340 = vmatpush1.bf16.msra.mxu0 %v1011
    %1341 = vmatprep.subr.bf16.mxu0 %v1016
    %1342 = vmatpush1.bf16.msra.mxu0 %v1015
    %1343 = vmatprep.subr.bf16.mxu0 %v1020
    %1344 = vmatpush1.bf16.msra.mxu0 %v1019
    %1345 = vmatprep.subr.bf16.mxu0 %v1024
    %1346 = vmatpush1.bf16.msra.mxu0 %v1023
    %1347 = vmatprep.subr.bf16.mxu0 %v1028
    %1348 = vmatpush1.bf16.msra.mxu0 %v1027
    %1349 = vmatprep.subr.bf16.mxu0 %v1032
    %1350 = vmatpush1.bf16.msra.mxu0 %v1031
    %1351 = vmatprep.subr.bf16.mxu0 %v1036
    %1352 = vmatpush1.bf16.msra.mxu0 %v1035
    %1353 = vmatprep.subr.bf16.mxu0 %v1040
    %1354 = vmatpush1.bf16.msra.mxu0 %v1039
    %1355 = vmatprep.subr.bf16.mxu0 %v1044
    %1356 = vmatpush1.bf16.msra.mxu0 %v1043
    %1357 = vmatprep.subr.bf16.mxu0 %v1048
    %1358 = vmatpush1.bf16.msra.mxu0 %v1047
    %1359 = vmatprep.subr.bf16.mxu0 %v1052
    %1360 = vmatpush1.bf16.msra.mxu0 %v1051
    %1361 = vmatprep.mubr.bf16.mxu0 %v72
    %1362 = vmatmul.mubr.bf16.gmra.mrb[0].mxu0 %v71
    %v1363 = vpop.f32.mrb[0].mxu0
    %v1364 = vadd.f32 %v1323, %v1363
    %v1365 = vpop.f32.mrb[0].mxu0
    %v1366 = vadd.f32 %v1325, %v1365
    %v1367 = vpop.f32.mrb[0].mxu0
    %v1368 = vpop.f32.mrb[0].mxu0
    %1369 = vdwg.mxu0
    %1370 = vmatprep.subr.bf16.mxu0 %v866
    %1371 = vmatpush1.bf16.msra.mxu0 %v865
    %1372 = vmatprep.subr.bf16.mxu0 %v870
    %1373 = vmatpush1.bf16.msra.mxu0 %v869
    %1374 = vmatprep.subr.bf16.mxu0 %v874
    %1375 = vmatpush1.bf16.msra.mxu0 %v873
    %1376 = vmatprep.subr.bf16.mxu0 %v878
    %1377 = vmatpush1.bf16.msra.mxu0 %v877
    %1378 = vmatprep.subr.bf16.mxu0 %v882
    %1379 = vmatpush1.bf16.msra.mxu0 %v881
    %1380 = vmatprep.subr.bf16.mxu0 %v886
    %1381 = vmatpush1.bf16.msra.mxu0 %v885
    %1382 = vmatprep.subr.bf16.mxu0 %v890
    %1383 = vmatpush1.bf16.msra.mxu0 %v889
    %1384 = vmatprep.subr.bf16.mxu0 %v894
    %1385 = vmatpush1.bf16.msra.mxu0 %v893
    %1386 = vmatprep.subr.bf16.mxu0 %v898
    %1387 = vmatpush1.bf16.msra.mxu0 %v897
    %1388 = vmatprep.subr.bf16.mxu0 %v902
    %1389 = vmatpush1.bf16.msra.mxu0 %v901
    %1390 = vmatprep.subr.bf16.mxu0 %v906
    %1391 = vmatpush1.bf16.msra.mxu0 %v905
    %1392 = vmatprep.subr.bf16.mxu0 %v910
    %1393 = vmatpush1.bf16.msra.mxu0 %v909
    %1394 = vmatprep.subr.bf16.mxu0 %v914
    %1395 = vmatpush1.bf16.msra.mxu0 %v913
    %1396 = vmatprep.subr.bf16.mxu0 %v918
    %1397 = vmatpush1.bf16.msra.mxu0 %v917
    %1398 = vmatprep.subr.bf16.mxu0 %v922
    %1399 = vmatpush1.bf16.msra.mxu0 %v921
    %1400 = vmatprep.subr.bf16.mxu0 %v926
    %1401 = vmatpush1.bf16.msra.mxu0 %v925
    %1402 = vmatprep.mubr.bf16.mxu0 %v68
    %1403 = vmatmul.mubr.bf16.gmra.mrb[0].mxu0 %v67
    %v1404 = vpop.f32.mrb[0].mxu0
    %v1405 = vadd.f32 %v278, %v1404
    %v1406 = vpop.f32.mrb[0].mxu0
    %v1407 = vadd.f32 %v282, %v1406
    %v1408 = vpop.f32.mrb[0].mxu0
    %v1409 = vpop.f32.mrb[0].mxu0
    %1410 = vdwg.mxu0
    %1411 = vmatprep.subr.bf16.mxu0 %v930
    %1412 = vmatpush1.bf16.msra.mxu0 %v929
    %1413 = vmatprep.subr.bf16.mxu0 %v934
    %1414 = vmatpush1.bf16.msra.mxu0 %v933
    %1415 = vmatprep.subr.bf16.mxu0 %v938
    %1416 = vmatpush1.bf16.msra.mxu0 %v937
    %1417 = vmatprep.subr.bf16.mxu0 %v942
    %1418 = vmatpush1.bf16.msra.mxu0 %v941
    %1419 = vmatprep.subr.bf16.mxu0 %v946
    %1420 = vmatpush1.bf16.msra.mxu0 %v945
    %1421 = vmatprep.subr.bf16.mxu0 %v950
    %1422 = vmatpush1.bf16.msra.mxu0 %v949
    %1423 = vmatprep.subr.bf16.mxu0 %v954
    %1424 = vmatpush1.bf16.msra.mxu0 %v953
    %1425 = vmatprep.subr.bf16.mxu0 %v958
    %1426 = vmatpush1.bf16.msra.mxu0 %v957
    %1427 = vmatprep.subr.bf16.mxu0 %v962
    %1428 = vmatpush1.bf16.msra.mxu0 %v961
    %1429 = vmatprep.subr.bf16.mxu0 %v966
    %1430 = vmatpush1.bf16.msra.mxu0 %v965
    %1431 = vmatprep.subr.bf16.mxu0 %v970
    %1432 = vmatpush1.bf16.msra.mxu0 %v969
    %1433 = vmatprep.subr.bf16.mxu0 %v974
    %1434 = vmatpush1.bf16.msra.mxu0 %v973
    %1435 = vmatprep.subr.bf16.mxu0 %v978
    %1436 = vmatpush1.bf16.msra.mxu0 %v977
    %1437 = vmatprep.subr.bf16.mxu0 %v982
    %1438 = vmatpush1.bf16.msra.mxu0 %v981
    %1439 = vmatprep.subr.bf16.mxu0 %v986
    %1440 = vmatpush1.bf16.msra.mxu0 %v985
    %1441 = vmatprep.subr.bf16.mxu0 %v990
    %1442 = vmatpush1.bf16.msra.mxu0 %v989
    %1443 = vmatprep.mubr.bf16.mxu0 %v70
    %1444 = vmatmul.mubr.bf16.gmra.mrb[0].mxu0 %v69
    %v1445 = vpop.f32.mrb[0].mxu0
    %v1446 = vadd.f32 %v1405, %v1445
    %v1447 = vpop.f32.mrb[0].mxu0
    %v1448 = vadd.f32 %v1407, %v1447
    %v1449 = vpop.f32.mrb[0].mxu0
    %v1450 = vpop.f32.mrb[0].mxu0
    %1451 = vdwg.mxu0
    %1452 = vmatprep.subr.bf16.mxu0 %v994
    %1453 = vmatpush1.bf16.msra.mxu0 %v993
    %1454 = vmatprep.subr.bf16.mxu0 %v998
    %1455 = vmatpush1.bf16.msra.mxu0 %v997
    %1456 = vmatprep.subr.bf16.mxu0 %v1002
    %1457 = vmatpush1.bf16.msra.mxu0 %v1001
    %1458 = vmatprep.subr.bf16.mxu0 %v1006
    %1459 = vmatpush1.bf16.msra.mxu0 %v1005
    %1460 = vmatprep.subr.bf16.mxu0 %v1010
    %1461 = vmatpush1.bf16.msra.mxu0 %v1009
    %1462 = vmatprep.subr.bf16.mxu0 %v1014
    %1463 = vmatpush1.bf16.msra.mxu0 %v1013
    %1464 = vmatprep.subr.bf16.mxu0 %v1018
    %1465 = vmatpush1.bf16.msra.mxu0 %v1017
    %1466 = vmatprep.subr.bf16.mxu0 %v1022
    %1467 = vmatpush1.bf16.msra.mxu0 %v1021
    %1468 = vmatprep.subr.bf16.mxu0 %v1026
    %1469 = vmatpush1.bf16.msra.mxu0 %v1025
    %1470 = vmatprep.subr.bf16.mxu0 %v1030
    %1471 = vmatpush1.bf16.msra.mxu0 %v1029
    %1472 = vmatprep.subr.bf16.mxu0 %v1034
    %1473 = vmatpush1.bf16.msra.mxu0 %v1033
    %1474 = vmatprep.subr.bf16.mxu0 %v1038
    %1475 = vmatpush1.bf16.msra.mxu0 %v1037
    %1476 = vmatprep.subr.bf16.mxu0 %v1042
    %1477 = vmatpush1.bf16.msra.mxu0 %v1041
    %1478 = vmatprep.subr.bf16.mxu0 %v1046
    %1479 = vmatpush1.bf16.msra.mxu0 %v1045
    %1480 = vmatprep.subr.bf16.mxu0 %v1050
    %1481 = vmatpush1.bf16.msra.mxu0 %v1049
    %1482 = vmatprep.subr.bf16.mxu0 %v1054
    %1483 = vmatpush1.bf16.msra.mxu0 %v1053
    %1484 = vmatprep.mubr.bf16.mxu0 %v72
    %1485 = vmatmul.mubr.bf16.gmra.mrb[0].mxu0 %v71
    %v1486 = vpop.f32.mrb[0].mxu0
    %v1487 = vadd.f32 %v1446, %v1486
    %v1488 = vpop.f32.mrb[0].mxu0
    %v1489 = vadd.f32 %v1448, %v1488
    %v1490 = vpop.f32.mrb[0].mxu0
    %v1491 = vpop.f32.mrb[0].mxu0
    %1492 = vdwg.mxu0
    %v1493 = vmax.f32 %v1364, 0.0
    %v1494 = vmax.f32 %v1366, 0.0
    %v1495 = vmax.f32 %v1487, 0.0
    %v1496 = vmax.f32 %v1489, 0.0
    %v1497 = vpack.c.bf16 %v1493, %v1493
    %v1498 = vpack.c.bf16 %v1494, %v1494
    %v1499 = vpack.c.bf16 %v1495, %v1495
    %v1500 = vpack.c.bf16 %v1496, %v1496
    %v1501 = vld [vmem:[#allocation7] sm:$0xf]
    %v1502 = vld [vmem:[#allocation7 + $0x4] sm:$0xf]
    %v1503 = vld [vmem:[#allocation7 + $0x8] sm:$0xf]
    %v1504 = vld [vmem:[#allocation7 + $0xc] sm:$0xf]
    %v1505 = vld [vmem:[#allocation7 + $0x10] sm:$0xf]
    %v1506 = vld [vmem:[#allocation7 + $0x14] sm:$0xf]
    %v1507 = vld [vmem:[#allocation7 + $0x18] sm:$0xf]
    %v1508 = vld [vmem:[#allocation7 + $0x1c] sm:$0xf]
    %v1509 = vld [vmem:[#allocation7 + $0x20] sm:$0xf]
    %v1510 = vld [vmem:[#allocation7 + $0x24] sm:$0xf]
    %v1511 = vld [vmem:[#allocation7 + $0x28] sm:$0xf]
    %v1512 = vld [vmem:[#allocation7 + $0x2c] sm:$0xf]
    %v1513 = vld [vmem:[#allocation7 + $0x30] sm:$0xf]
    %v1514 = vld [vmem:[#allocation7 + $0x34] sm:$0xf]
    %v1515 = vld [vmem:[#allocation7 + $0x38] sm:$0xf]
    %v1516 = vld [vmem:[#allocation7 + $0x3c] sm:$0xf]
    %v1517 = vld [vmem:[#allocation7 + $0x40] sm:$0xf]
    %v1518 = vld [vmem:[#allocation7 + $0x44] sm:$0xf]
    %v1519 = vld [vmem:[#allocation7 + $0x48] sm:$0xf]
    %v1520 = vld [vmem:[#allocation7 + $0x4c] sm:$0xf]
    %v1521 = vld [vmem:[#allocation7 + $0x50] sm:$0xf]
    %v1522 = vld [vmem:[#allocation7 + $0x54] sm:$0xf]
    %v1523 = vld [vmem:[#allocation7 + $0x58] sm:$0xf]
    %v1524 = vld [vmem:[#allocation7 + $0x5c] sm:$0xf]
    %v1525 = vld [vmem:[#allocation7 + $0x60] sm:$0xf]
    %v1526 = vld [vmem:[#allocation7 + $0x64] sm:$0xf]
    %v1527 = vld [vmem:[#allocation7 + $0x68] sm:$0xf]
    %v1528 = vld [vmem:[#allocation7 + $0x6c] sm:$0xf]
    %v1529 = vld [vmem:[#allocation7 + $0x70] sm:$0xf]
    %v1530 = vld [vmem:[#allocation7 + $0x74] sm:$0xf]
    %v1531 = vld [vmem:[#allocation7 + $0x78] sm:$0xf]
    %v1532 = vld [vmem:[#allocation7 + $0x7c] sm:$0xf]
    %v1533 = vld [vmem:[#allocation7 + $0x80] sm:$0xf]
    %v1534 = vld [vmem:[#allocation7 + $0x84] sm:$0xf]
    %v1535 = vld [vmem:[#allocation7 + $0x88] sm:$0xf]
    %v1536 = vld [vmem:[#allocation7 + $0x8c] sm:$0xf]
    %v1537 = vld [vmem:[#allocation7 + $0x90] sm:$0xf]
    %v1538 = vld [vmem:[#allocation7 + $0x94] sm:$0xf]
    %v1539 = vld [vmem:[#allocation7 + $0x98] sm:$0xf]
    %v1540 = vld [vmem:[#allocation7 + $0x9c] sm:$0xf]
    %v1541 = vld [vmem:[#allocation7 + $0xa0] sm:$0xf]
    %v1542 = vld [vmem:[#allocation7 + $0xa4] sm:$0xf]
    %v1543 = vld [vmem:[#allocation7 + $0xa8] sm:$0xf]
    %v1544 = vld [vmem:[#allocation7 + $0xac] sm:$0xf]
    %v1545 = vld [vmem:[#allocation7 + $0xb0] sm:$0xf]
    %v1546 = vld [vmem:[#allocation7 + $0xb4] sm:$0xf]
    %v1547 = vld [vmem:[#allocation7 + $0xb8] sm:$0xf]
    %v1548 = vld [vmem:[#allocation7 + $0xbc] sm:$0xf]
    %v1549 = vld [vmem:[#allocation7 + $0xc0] sm:$0xf]
    %v1550 = vld [vmem:[#allocation7 + $0xc4] sm:$0xf]
    %v1551 = vld [vmem:[#allocation7 + $0xc8] sm:$0xf]
    %v1552 = vld [vmem:[#allocation7 + $0xcc] sm:$0xf]
    %v1553 = vld [vmem:[#allocation7 + $0xd0] sm:$0xf]
    %v1554 = vld [vmem:[#allocation7 + $0xd4] sm:$0xf]
    %v1555 = vld [vmem:[#allocation7 + $0xd8] sm:$0xf]
    %v1556 = vld [vmem:[#allocation7 + $0xdc] sm:$0xf]
    %v1557 = vld [vmem:[#allocation7 + $0xe0] sm:$0xf]
    %v1558 = vld [vmem:[#allocation7 + $0xe4] sm:$0xf]
    %v1559 = vld [vmem:[#allocation7 + $0xe8] sm:$0xf]
    %v1560 = vld [vmem:[#allocation7 + $0xec] sm:$0xf]
    %v1561 = vld [vmem:[#allocation7 + $0xf0] sm:$0xf]
    %v1562 = vld [vmem:[#allocation7 + $0xf4] sm:$0xf]
    %v1563 = vld [vmem:[#allocation7 + $0xf8] sm:$0xf]
    %v1564 = vld [vmem:[#allocation7 + $0xfc] sm:$0xf]
    %v1565 = vld [vmem:[%s4] sm:$0x1]
    %v1567 = vlaneseq
    %v1568 = vshrl.u32 %v1567, 7
    %v1569 = vsub.s32 0, %v1568
    %v1570 = vrot.slane %v1565, %v1569
    %v1636 = vunpack.c.l.b16 %v1501
    %v1637 = vunpack.c.l.b16 %v1502
    %v1638 = vunpack.c.l.b16 %v1503
    %v1639 = vunpack.c.l.b16 %v1504
    %v1640 = vunpack.c.l.b16 %v1505
    %v1641 = vunpack.c.l.b16 %v1506
    %v1642 = vunpack.c.l.b16 %v1507
    %v1643 = vunpack.c.l.b16 %v1508
    %v1644 = vunpack.c.l.b16 %v1509
    %v1645 = vunpack.c.l.b16 %v1510
    %v1646 = vunpack.c.l.b16 %v1511
    %v1647 = vunpack.c.l.b16 %v1512
    %v1648 = vunpack.c.l.b16 %v1513
    %v1649 = vunpack.c.l.b16 %v1514
    %v1650 = vunpack.c.l.b16 %v1515
    %v1651 = vunpack.c.l.b16 %v1516
    %v1652 = vunpack.c.l.b16 %v1517
    %v1653 = vunpack.c.l.b16 %v1518
    %v1654 = vunpack.c.l.b16 %v1519
    %v1655 = vunpack.c.l.b16 %v1520
    %v1656 = vunpack.c.l.b16 %v1521
    %v1657 = vunpack.c.l.b16 %v1522
    %v1658 = vunpack.c.l.b16 %v1523
    %v1659 = vunpack.c.l.b16 %v1524
    %v1660 = vunpack.c.l.b16 %v1525
    %v1661 = vunpack.c.l.b16 %v1526
    %v1662 = vunpack.c.l.b16 %v1527
    %v1663 = vunpack.c.l.b16 %v1528
    %v1664 = vunpack.c.l.b16 %v1529
    %v1665 = vunpack.c.l.b16 %v1530
    %v1666 = vunpack.c.l.b16 %v1531
    %v1667 = vunpack.c.l.b16 %v1532
    %v1668 = vunpack.c.l.b16 %v1533
    %v1669 = vunpack.c.l.b16 %v1534
    %v1670 = vunpack.c.l.b16 %v1535
    %v1671 = vunpack.c.l.b16 %v1536
    %v1672 = vunpack.c.l.b16 %v1537
    %v1673 = vunpack.c.l.b16 %v1538
    %v1674 = vunpack.c.l.b16 %v1539
    %v1675 = vunpack.c.l.b16 %v1540
    %v1676 = vunpack.c.l.b16 %v1541
    %v1677 = vunpack.c.l.b16 %v1542
    %v1678 = vunpack.c.l.b16 %v1543
    %v1679 = vunpack.c.l.b16 %v1544
    %v1680 = vunpack.c.l.b16 %v1545
    %v1681 = vunpack.c.l.b16 %v1546
    %v1682 = vunpack.c.l.b16 %v1547
    %v1683 = vunpack.c.l.b16 %v1548
    %v1684 = vunpack.c.l.b16 %v1549
    %v1685 = vunpack.c.l.b16 %v1550
    %v1686 = vunpack.c.l.b16 %v1551
    %v1687 = vunpack.c.l.b16 %v1552
    %v1688 = vunpack.c.l.b16 %v1553
    %v1689 = vunpack.c.l.b16 %v1554
    %v1690 = vunpack.c.l.b16 %v1555
    %v1691 = vunpack.c.l.b16 %v1556
    %v1692 = vunpack.c.l.b16 %v1557
    %v1693 = vunpack.c.l.b16 %v1558
    %v1694 = vunpack.c.l.b16 %v1559
    %v1695 = vunpack.c.l.b16 %v1560
    %v1696 = vunpack.c.l.b16 %v1561
    %v1697 = vunpack.c.l.b16 %v1562
    %v1698 = vunpack.c.l.b16 %v1563
    %v1699 = vunpack.c.l.b16 %v1564
    %v1700 = vpack.c.b16 %v1637, %v1636
    %v1701 = vpack.c.b16 %v1639, %v1638
    %v1702 = vpack.c.b16 %v1641, %v1640
    %v1703 = vpack.c.b16 %v1643, %v1642
    %v1704 = vpack.c.b16 %v1645, %v1644
    %v1705 = vpack.c.b16 %v1647, %v1646
    %v1706 = vpack.c.b16 %v1649, %v1648
    %v1707 = vpack.c.b16 %v1651, %v1650
    %v1708 = vpack.c.b16 %v1653, %v1652
    %v1709 = vpack.c.b16 %v1655, %v1654
    %v1710 = vpack.c.b16 %v1657, %v1656
    %v1711 = vpack.c.b16 %v1659, %v1658
    %v1712 = vpack.c.b16 %v1661, %v1660
    %v1713 = vpack.c.b16 %v1663, %v1662
    %v1714 = vpack.c.b16 %v1665, %v1664
    %v1715 = vpack.c.b16 %v1667, %v1666
    %v1716 = vpack.c.b16 %v1669, %v1668
    %v1717 = vpack.c.b16 %v1671, %v1670
    %v1718 = vpack.c.b16 %v1673, %v1672
    %v1719 = vpack.c.b16 %v1675, %v1674
    %v1720 = vpack.c.b16 %v1677, %v1676
    %v1721 = vpack.c.b16 %v1679, %v1678
    %v1722 = vpack.c.b16 %v1681, %v1680
    %v1723 = vpack.c.b16 %v1683, %v1682
    %v1724 = vpack.c.b16 %v1685, %v1684
    %v1725 = vpack.c.b16 %v1687, %v1686
    %v1726 = vpack.c.b16 %v1689, %v1688
    %v1727 = vpack.c.b16 %v1691, %v1690
    %v1728 = vpack.c.b16 %v1693, %v1692
    %v1729 = vpack.c.b16 %v1695, %v1694
    %v1730 = vpack.c.b16 %v1697, %v1696
    %v1731 = vpack.c.b16 %v1699, %v1698
    %1764 = vmatprep.subr.bf16.mxu0 0
    %1765 = vmatpush1.bf16.msra.mxu0 %v1700
    %1766 = vmatprep.subr.bf16.mxu0 0
    %1767 = vmatpush1.bf16.msra.mxu0 %v1701
    %1768 = vmatprep.subr.bf16.mxu0 0
    %1769 = vmatpush1.bf16.msra.mxu0 %v1702
    %1770 = vmatprep.subr.bf16.mxu0 0
    %1771 = vmatpush1.bf16.msra.mxu0 %v1703
    %1772 = vmatprep.subr.bf16.mxu0 0
    %1773 = vmatpush1.bf16.msra.mxu0 %v1704
    %1774 = vmatprep.subr.bf16.mxu0 0
    %1775 = vmatpush1.bf16.msra.mxu0 %v1705
    %1776 = vmatprep.subr.bf16.mxu0 0
    %1777 = vmatpush1.bf16.msra.mxu0 %v1706
    %1778 = vmatprep.subr.bf16.mxu0 0
    %1779 = vmatpush1.bf16.msra.mxu0 %v1707
    %1780 = vmatprep.subr.bf16.mxu0 0
    %1781 = vmatpush1.bf16.msra.mxu0 %v1708
    %1782 = vmatprep.subr.bf16.mxu0 0
    %1783 = vmatpush1.bf16.msra.mxu0 %v1709
    %1784 = vmatprep.subr.bf16.mxu0 0
    %1785 = vmatpush1.bf16.msra.mxu0 %v1710
    %1786 = vmatprep.subr.bf16.mxu0 0
    %1787 = vmatpush1.bf16.msra.mxu0 %v1711
    %1788 = vmatprep.subr.bf16.mxu0 0
    %1789 = vmatpush1.bf16.msra.mxu0 %v1712
    %1790 = vmatprep.subr.bf16.mxu0 0
    %1791 = vmatpush1.bf16.msra.mxu0 %v1713
    %1792 = vmatprep.subr.bf16.mxu0 0
    %1793 = vmatpush1.bf16.msra.mxu0 %v1714
    %1794 = vmatprep.subr.bf16.mxu0 0
    %1795 = vmatpush1.bf16.msra.mxu0 %v1715
    %1796 = vmatprep.mubr.bf16.mxu0 %v1498
    %1797 = vmatmul.mubr.bf16.gmra.mrb[0].mxu0 %v1497
    %v1798 = vpop.f32.mrb[0].mxu0
    %v1799 = vadd.f32 %v1570, %v1798
    %v1800 = vpop.f32.mrb[0].mxu0
    %v1801 = vpop.f32.mrb[0].mxu0
    %v1802 = vpop.f32.mrb[0].mxu0
    %1803 = vdwg.mxu0
    %1804 = vmatprep.subr.bf16.mxu0 0
    %1805 = vmatpush1.bf16.msra.mxu0 %v1716
    %1806 = vmatprep.subr.bf16.mxu0 0
    %1807 = vmatpush1.bf16.msra.mxu0 %v1717
    %1808 = vmatprep.subr.bf16.mxu0 0
    %1809 = vmatpush1.bf16.msra.mxu0 %v1718
    %1810 = vmatprep.subr.bf16.mxu0 0
    %1811 = vmatpush1.bf16.msra.mxu0 %v1719
    %1812 = vmatprep.subr.bf16.mxu0 0
    %1813 = vmatpush1.bf16.msra.mxu0 %v1720
    %1814 = vmatprep.subr.bf16.mxu0 0
    %1815 = vmatpush1.bf16.msra.mxu0 %v1721
    %1816 = vmatprep.subr.bf16.mxu0 0
    %1817 = vmatpush1.bf16.msra.mxu0 %v1722
    %1818 = vmatprep.subr.bf16.mxu0 0
    %1819 = vmatpush1.bf16.msra.mxu0 %v1723
    %1820 = vmatprep.subr.bf16.mxu0 0
    %1821 = vmatpush1.bf16.msra.mxu0 %v1724
    %1822 = vmatprep.subr.bf16.mxu0 0
    %1823 = vmatpush1.bf16.msra.mxu0 %v1725
    %1824 = vmatprep.subr.bf16.mxu0 0
    %1825 = vmatpush1.bf16.msra.mxu0 %v1726
    %1826 = vmatprep.subr.bf16.mxu0 0
    %1827 = vmatpush1.bf16.msra.mxu0 %v1727
    %1828 = vmatprep.subr.bf16.mxu0 0
    %1829 = vmatpush1.bf16.msra.mxu0 %v1728
    %1830 = vmatprep.subr.bf16.mxu0 0
    %1831 = vmatpush1.bf16.msra.mxu0 %v1729
    %1832 = vmatprep.subr.bf16.mxu0 0
    %1833 = vmatpush1.bf16.msra.mxu0 %v1730
    %1834 = vmatprep.subr.bf16.mxu0 0
    %1835 = vmatpush1.bf16.msra.mxu0 %v1731
    %1836 = vmatprep.mubr.bf16.mxu0 %v1500
    %1837 = vmatmul.mubr.bf16.gmra.mrb[0].mxu0 %v1499
    %v1838 = vpop.f32.mrb[0].mxu0
    %v1839 = vadd.f32 %v1799, %v1838
    %v1840 = vpop.f32.mrb[0].mxu0
    %v1841 = vpop.f32.mrb[0].mxu0
    %v1842 = vpop.f32.mrb[0].mxu0
    %1843 = vdwg.mxu0
    %v1844 = vpack.c.bf16 %v1839, %v1839
    %1845 = vst [vmem:[#allocation8] sm:$0xf] %v1844
    // Predicated region
    $region34: #{extended_classifier.1} parent=1 // pred_check
      _
    $region35: #{extended_classifier.1} parent=1 // pred_check_branch
      %1847 = sbr.rel (0) target = $region37
    $region36: #{extended_classifier.1} parent=1 // pred_region
      %s1849 = ssub.s32 64, 64
      %1850 = vsyncadd [#allocation4], %s1849
      %s1852 = sshll.u32 [#allocation8], 4
      %s1853 = int_to_ptr.vmem [resolvable:$true] %s1852
      %1855 = dma.vmem_to_hbm [thread:$0]  %s1853, 64, %s5, [#allocation4]
    $region37: #{extended_classifier.1} parent=1 // pred_fallthru
      _
    // Predicated region
    $region38: #{extended_classifier.1} parent=1 // pred_check
      _
    $region39: #{extended_classifier.1} parent=1 // pred_check_branch
      %1857 = sbr.rel (0) target = $region41
    $region40: #{extended_classifier.1} parent=1 // pred_region
      %1858 = dma.done [#allocation4], 64
    $region41: #{extended_classifier.1} parent=1 // pred_fallthru
      _
    %1859 = vsyncpa [#allocation3], 1
    %1860 = vsyncpa [#allocation6], 1
    %1861 = vsyncpa [#allocation4], 1

</llo_original>
